<compile_context>
chip_gen: v5e
topology: v5e:2x2
jax: 0.10.0
libtpu: 0.0.40
codegen_flags: <defaults>
</compile_context>

<pallas_src>
import functools

import jax
import jax.numpy as jnp
from jax.experimental import pallas as pl
from jax.experimental.pallas import tpu as pltpu


def _pointgencon_kernel(
    x_ref,
    w1_ref, t1_ref,
    w2_ref, t2_ref,
    w3_ref, t3_ref,
    w4_ref, b4_ref,
    o_ref,
    *, out_factor, use_tanh,
):
    # x block: (C1, tn) f32 -> bf16 operands for the MXU, f32 accumulation.
    x = x_ref[...].astype(jnp.bfloat16)

    # layer 1: conv1 (C1->C1), BN scale folded into W rows, shift t1 (C1,1)
    h = jnp.dot(w1_ref[...], x, preferred_element_type=jnp.float32)
    h = jnp.maximum(h + t1_ref[...], 0.0).astype(jnp.bfloat16)

    # layer 2: conv2 (C1->C1/2) + folded BN + ReLU
    h = jnp.dot(w2_ref[...], h, preferred_element_type=jnp.float32)
    h = jnp.maximum(h + t2_ref[...], 0.0).astype(jnp.bfloat16)

    # layer 3: conv3 (C1/2->C1/4) + folded BN + ReLU
    h = jnp.dot(w3_ref[...], h, preferred_element_type=jnp.float32)
    h = jnp.maximum(h + t3_ref[...], 0.0).astype(jnp.bfloat16)

    # layer 4: conv4 (C1/4 -> 3).  out_factor is pre-folded into w4/b4 for the
    # use_tanh=False path; for use_tanh=True it is applied after tanh here.
    out = jnp.dot(w4_ref[...], h, preferred_element_type=jnp.float32) + b4_ref[...]
    if use_tanh:
        out = out_factor * jnp.tanh(out)
    o_ref[...] = out.astype(o_ref.dtype)


def pointgencon_forward(x, params, *, out_factor=200.0, use_tanh=False, tn=512):
    """x: (B, C1, N) float32, PyTorch NCL layout. Returns (B, 3, N) float32."""
    B, C1, N = x.shape
    C2, C3 = C1 // 2, C1 // 4

    tn = min(tn, N)
    assert N % tn == 0, "N must be divisible by the point tile tn"
    assert tn == N or tn % 128 == 0, "tn must be lane-aligned (multiple of 128)"

    (w1f, t1, w2f, t2, w3f, t3, w4f, b4f) = params

    kernel = functools.partial(
        _pointgencon_kernel, out_factor=out_factor, use_tanh=use_tanh)

    # Weights / shifts are grid-invariant: constant index_map -> fetched once.
    def rep(shape):
        return pl.BlockSpec(shape, lambda b, j: (0, 0))

    out = pl.pallas_call(
        kernel,
        out_shape=jax.ShapeDtypeStruct((B, 3, N), jnp.float32),
        grid_spec=pltpu.PrefetchScalarGridSpec(
            num_scalar_prefetch=0,
            grid=(B, N // tn),
            in_specs=[
                # x tile: channels on sublanes, points on lanes (batch squeezed)
                pl.BlockSpec((None, C1, tn), lambda b, j: (b, 0, j)),
                rep((C1, C1)), rep((C1, 1)),
                rep((C2, C1)), rep((C2, 1)),
                rep((C3, C2)), rep((C3, 1)),
                rep((3, C3)), rep((3, 1)),
            ],
            # lane-dense (3, tn) output block -> no padded lanes written back
            out_specs=pl.BlockSpec((None, 3, tn), lambda b, j: (b, 0, j)),
        ),
        compiler_params=pltpu.CompilerParams(
            dimension_semantics=("parallel", "parallel"),
            vmem_limit_bytes=32 * 1024 * 1024,
        ),
    )(x, w1f, t1, w2f, t2, w3f, t3, w4f, b4f)
    return out


def make_params(key, bottleneck_size, *, out_factor=200.0, use_tanh=False):
    """Deterministic synthetic parameters matching the PyTorch module's shapes.

    Conv1d weights (C_out, C_in, 1) are squeezed to (C_out, C_in); eval-mode
    BatchNorm1d (affine + running stats) and the conv bias are folded into the
    weight rows (scale) and a per-channel shift.  out_factor is folded into
    conv4 when use_tanh=False.  Weights are stored in bf16 (MXU operands),
    shifts in f32.
    """
    C1 = bottleneck_size
    C2, C3 = C1 // 2, C1 // 4
    eps = 1e-5
    keys = iter(list(jax.random.split(key, 20)))  # 4 convs * 2 + 3 BNs * 4 = 20

    def conv(c_out, c_in):
        w = jax.random.normal(next(keys), (c_out, c_in), jnp.float32) * 0.05
        b = jax.random.normal(next(keys), (c_out,), jnp.float32) * 0.05
        return w, b

    def bn(c):
        gamma = 1.0 + 0.1 * jax.random.normal(next(keys), (c,), jnp.float32)
        beta = 0.1 * jax.random.normal(next(keys), (c,), jnp.float32)
        mean = 0.1 * jax.random.normal(next(keys), (c,), jnp.float32)
        var = jax.nn.softplus(jax.random.normal(next(keys), (c,), jnp.float32)) + 0.5
        return gamma, beta, mean, var

    def fold(w, b, gamma, beta, mean, var):
        inv_std = gamma / jnp.sqrt(var + eps)                 # (c_out,)
        w_f = (w * inv_std[:, None]).astype(jnp.bfloat16)     # scale folded into rows
        t = ((b - mean) * inv_std + beta).reshape(-1, 1).astype(jnp.float32)
        return w_f, t

    w1, b1 = conv(C1, C1)
    bn1 = bn(C1)
    w2, b2 = conv(C2, C1)
    bn2 = bn(C2)
    w3, b3 = conv(C3, C2)
    bn3 = bn(C3)
    w4, b4 = conv(3, C3)

    w1f, t1 = fold(w1, b1, *bn1)
    w2f, t2 = fold(w2, b2, *bn2)
    w3f, t3 = fold(w3, b3, *bn3)

    factor = 1.0 if use_tanh else out_factor   # fold out_factor only when linear
    w4f = (factor * w4).astype(jnp.bfloat16)
    b4f = (factor * b4).reshape(-1, 1).astype(jnp.float32)

    params = (w1f, t1, w2f, t2, w3f, t3, w4f, b4f)
    raw = (w1, b1, bn1, w2, b2, bn2, w3, b3, bn3, w4, b4)
    return params, raw


def folded_reference(x, params, *, out_factor=200.0, use_tanh=False):
    """Pure-JAX reference using the exact folded bf16 params (kernel mechanics)."""
    (w1f, t1, w2f, t2, w3f, t3, w4f, b4f) = params
    h = x.astype(jnp.bfloat16)

    def layer(h, w, t):
        y = jnp.einsum("oc,bcn->bon", w, h, preferred_element_type=jnp.float32)
        return jnp.maximum(y + t[None, :, :], 0.0).astype(jnp.bfloat16)

    h = layer(h, w1f, t1)
    h = layer(h, w2f, t2)
    h = layer(h, w3f, t3)
    out = jnp.einsum("oc,bcn->bon", w4f, h,
                     preferred_element_type=jnp.float32) + b4f[None, :, :]
    if use_tanh:
        out = out_factor * jnp.tanh(out)
    return out


def reference_forward(x, raw, *, out_factor=200.0, use_tanh=False, eps=1e-5):
    """Pure-JAX f32 reference mirroring the PyTorch forward (eval-mode BN)."""
    (w1, b1, bn1, w2, b2, bn2, w3, b3, bn3, w4, b4) = raw

    def layer(h, w, b, bn_p):
        g, be, m, v = bn_p
        y = jnp.einsum("oc,bcn->bon", w, h) + b[None, :, None]
        y = (y - m[None, :, None]) / jnp.sqrt(v[None, :, None] + eps)
        y = g[None, :, None] * y + be[None, :, None]
        return jnp.maximum(y, 0.0)

    h = layer(x, w1, b1, bn1)
    h = layer(h, w2, b2, bn2)
    h = layer(h, w3, b3, bn3)
    out = jnp.einsum("oc,bcn->bon", w4, h) + b4[None, :, None]
    if use_tanh:
        return out_factor * jnp.tanh(out)
    return out_factor * out


if __name__ == "__main__":
    key = jax.random.PRNGKey(0)
    k_param, k_x = jax.random.split(key)

    # Small test shapes; bottleneck divisible by 4, N a multiple of the tile.
    B, bottleneck, N = 2, 256, 1024
    out_factor = 200.0
    use_tanh = False

    params, raw = make_params(k_param, bottleneck,
                              out_factor=out_factor, use_tanh=use_tanh)
    x = jax.random.normal(k_x, (B, bottleneck, N), jnp.float32)

    out = pointgencon_forward(x, params, out_factor=out_factor,
                              use_tanh=use_tanh, tn=512)
    out = jax.block_until_ready(out)
    assert out.shape == (B, 3, N), out.shape

    ref_folded = folded_reference(x, params, out_factor=out_factor,
                                  use_tanh=use_tanh)
    ref_full = reference_forward(x, raw, out_factor=out_factor,
                                 use_tanh=use_tanh)

    denom = float(jnp.max(jnp.abs(ref_full))) + 1e-6
    # Tight check: kernel vs same-bf16-params JAX reference (pure mechanics).
    err_mech = float(jnp.max(jnp.abs(out - ref_folded))) / denom
    # Loose check: kernel vs f32 PyTorch-semantics reference (bf16 rounding).
    err_sem = float(jnp.max(jnp.abs(out - ref_full))) / denom
    assert err_mech < 1e-3, f"mechanics mismatch: rel err {err_mech}"
    assert err_sem < 5e-2, f"semantic mismatch: rel err {err_sem}"
    print("KERNEL_OK")
</pallas_src>

<mosaic_0001>
module attributes {stable_mosaic.version = 11 : i64} {
  func.func @_pointgencon_kernel(%arg0: i32, %arg1: i32, %arg2: memref<1x256x512xf32, #tpu.memory_space<vmem>>, %arg3: memref<256x256xbf16, #tpu.memory_space<vmem>>, %arg4: memref<256x1xf32, #tpu.memory_space<vmem>>, %arg5: memref<128x256xbf16, #tpu.memory_space<vmem>>, %arg6: memref<128x1xf32, #tpu.memory_space<vmem>>, %arg7: memref<64x128xbf16, #tpu.memory_space<vmem>>, %arg8: memref<64x1xf32, #tpu.memory_space<vmem>>, %arg9: memref<3x64xbf16, #tpu.memory_space<vmem>>, %arg10: memref<3x1xf32, #tpu.memory_space<vmem>>, %arg11: memref<1x3x512xf32, #tpu.memory_space<vmem>>) attributes {dimension_semantics = [#tpu.dimension_semantics<parallel>, #tpu.dimension_semantics<parallel>], iteration_bounds = array<i64: 2, 2>, scalar_prefetch = 0 : i64, scratch_operands = 0 : i64, tpu.core_type = #tpu.core_type<tc>, window_params = [{transform_indices = @transform_0, window_bounds = array<i64: 1, 256, 512>}, {pipeline_mode = #tpu.pipeline_mode<synchronous>, transform_indices = @transform_1, window_bounds = array<i64: 256, 256>}, {pipeline_mode = #tpu.pipeline_mode<synchronous>, transform_indices = @transform_2, window_bounds = array<i64: 256, 1>}, {pipeline_mode = #tpu.pipeline_mode<synchronous>, transform_indices = @transform_3, window_bounds = array<i64: 128, 256>}, {pipeline_mode = #tpu.pipeline_mode<synchronous>, transform_indices = @transform_4, window_bounds = array<i64: 128, 1>}, {pipeline_mode = #tpu.pipeline_mode<synchronous>, transform_indices = @transform_5, window_bounds = array<i64: 64, 128>}, {pipeline_mode = #tpu.pipeline_mode<synchronous>, transform_indices = @transform_6, window_bounds = array<i64: 64, 1>}, {pipeline_mode = #tpu.pipeline_mode<synchronous>, transform_indices = @transform_7, window_bounds = array<i64: 3, 64>}, {pipeline_mode = #tpu.pipeline_mode<synchronous>, transform_indices = @transform_8, window_bounds = array<i64: 3, 1>}, {transform_indices = @transform_9, window_bounds = array<i64: 1, 3, 512>}]} {
    %c0 = arith.constant 0 : index
    %c0_0 = arith.constant 0 : index
    %c0_1 = arith.constant 0 : index
    %0 = vector.load %arg2[%c0, %c0_0, %c0_1] : memref<1x256x512xf32, #tpu.memory_space<vmem>>, vector<1x256x512xf32>
    %1 = vector.shape_cast %0 : vector<1x256x512xf32> to vector<256x512xf32>
    %2 = arith.truncf %1 : vector<256x512xf32> to vector<256x512xbf16>
    %c0_2 = arith.constant 0 : index
    %c0_3 = arith.constant 0 : index
    %3 = vector.load %arg3[%c0_2, %c0_3] : memref<256x256xbf16, #tpu.memory_space<vmem>>, vector<256x256xbf16>
    %cst = arith.constant dense<0.000000e+00> : vector<256x512xf32>
    %4 = tpu.matmul %3, %2, %cst {dimension_numbers = #tpu.dot_dimension_numbers<[1], [0], [0], [1], [0, 0, 1, 1], [], []>} : vector<256x256xbf16>, vector<256x512xbf16>, vector<256x512xf32> -> vector<256x512xf32>
    %c0_4 = arith.constant 0 : index
    %c0_5 = arith.constant 0 : index
    %5 = vector.load %arg4[%c0_4, %c0_5] : memref<256x1xf32, #tpu.memory_space<vmem>>, vector<256x1xf32>
    %6 = vector.broadcast %5 : vector<256x1xf32> to vector<256x512xf32>
    %7 = arith.addf %4, %6 : vector<256x512xf32>
    %cst_6 = arith.constant 0.000000e+00 : f32
    %8 = vector.broadcast %cst_6 : f32 to vector<256x512xf32>
    %9 = arith.maximumf %7, %8 : vector<256x512xf32>
    %10 = arith.truncf %9 : vector<256x512xf32> to vector<256x512xbf16>
    %c0_7 = arith.constant 0 : index
    %c0_8 = arith.constant 0 : index
    %11 = vector.load %arg5[%c0_7, %c0_8] : memref<128x256xbf16, #tpu.memory_space<vmem>>, vector<128x256xbf16>
    %cst_9 = arith.constant dense<0.000000e+00> : vector<128x512xf32>
    %12 = tpu.matmul %11, %10, %cst_9 {dimension_numbers = #tpu.dot_dimension_numbers<[1], [0], [0], [1], [0, 0, 1, 1], [], []>} : vector<128x256xbf16>, vector<256x512xbf16>, vector<128x512xf32> -> vector<128x512xf32>
    %c0_10 = arith.constant 0 : index
    %c0_11 = arith.constant 0 : index
    %13 = vector.load %arg6[%c0_10, %c0_11] : memref<128x1xf32, #tpu.memory_space<vmem>>, vector<128x1xf32>
    %14 = vector.broadcast %13 : vector<128x1xf32> to vector<128x512xf32>
    %15 = arith.addf %12, %14 : vector<128x512xf32>
    %cst_12 = arith.constant 0.000000e+00 : f32
    %16 = vector.broadcast %cst_12 : f32 to vector<128x512xf32>
    %17 = arith.maximumf %15, %16 : vector<128x512xf32>
    %18 = arith.truncf %17 : vector<128x512xf32> to vector<128x512xbf16>
    %c0_13 = arith.constant 0 : index
    %c0_14 = arith.constant 0 : index
    %19 = vector.load %arg7[%c0_13, %c0_14] : memref<64x128xbf16, #tpu.memory_space<vmem>>, vector<64x128xbf16>
    %cst_15 = arith.constant dense<0.000000e+00> : vector<64x512xf32>
    %20 = tpu.matmul %19, %18, %cst_15 {dimension_numbers = #tpu.dot_dimension_numbers<[1], [0], [0], [1], [0, 0, 1, 1], [], []>} : vector<64x128xbf16>, vector<128x512xbf16>, vector<64x512xf32> -> vector<64x512xf32>
    %c0_16 = arith.constant 0 : index
    %c0_17 = arith.constant 0 : index
    %21 = vector.load %arg8[%c0_16, %c0_17] : memref<64x1xf32, #tpu.memory_space<vmem>>, vector<64x1xf32>
    %22 = vector.broadcast %21 : vector<64x1xf32> to vector<64x512xf32>
    %23 = arith.addf %20, %22 : vector<64x512xf32>
    %cst_18 = arith.constant 0.000000e+00 : f32
    %24 = vector.broadcast %cst_18 : f32 to vector<64x512xf32>
    %25 = arith.maximumf %23, %24 : vector<64x512xf32>
    %26 = arith.truncf %25 : vector<64x512xf32> to vector<64x512xbf16>
    %c0_19 = arith.constant 0 : index
    %c0_20 = arith.constant 0 : index
    %27 = vector.load %arg9[%c0_19, %c0_20] : memref<3x64xbf16, #tpu.memory_space<vmem>>, vector<3x64xbf16>
    %cst_21 = arith.constant dense<0.000000e+00> : vector<3x512xf32>
    %28 = tpu.matmul %27, %26, %cst_21 {dimension_numbers = #tpu.dot_dimension_numbers<[1], [0], [0], [1], [0, 0, 1, 1], [], []>} : vector<3x64xbf16>, vector<64x512xbf16>, vector<3x512xf32> -> vector<3x512xf32>
    %c0_22 = arith.constant 0 : index
    %c0_23 = arith.constant 0 : index
    %29 = vector.load %arg10[%c0_22, %c0_23] : memref<3x1xf32, #tpu.memory_space<vmem>>, vector<3x1xf32>
    %30 = vector.broadcast %29 : vector<3x1xf32> to vector<3x512xf32>
    %31 = arith.addf %28, %30 : vector<3x512xf32>
    %c0_24 = arith.constant 0 : index
    %c0_25 = arith.constant 0 : index
    %c0_26 = arith.constant 0 : index
    %32 = vector.load %arg11[%c0_24, %c0_25, %c0_26] : memref<1x3x512xf32, #tpu.memory_space<vmem>>, vector<1x3x512xf32>
    %33 = vector.shape_cast %32 : vector<1x3x512xf32> to vector<3x512xf32>
    %34 = vector.shape_cast %31 : vector<3x512xf32> to vector<1x3x512xf32>
    tpu.vector_store %arg11[%c0_24, %c0_25, %c0_26], %34 {strides = array<i32>} : memref<1x3x512xf32, #tpu.memory_space<vmem>>, vector<1x3x512xf32>,
    return
  }
  func.func @transform_0(%arg0: i32, %arg1: i32) -> (i32, i32, i32) {
    %c0_i32 = arith.constant 0 : i32
    %c0_i32_0 = arith.constant 0 : i32
    return %arg0, %c0_i32, %arg1 : i32, i32, i32
  }
  func.func @transform_1(%arg0: i32, %arg1: i32) -> (i32, i32) {
    %c0_i32 = arith.constant 0 : i32
    %c0_i32_0 = arith.constant 0 : i32
    %c0_i32_1 = arith.constant 0 : i32
    return %c0_i32, %c0_i32_0 : i32, i32
  }
  func.func @transform_2(%arg0: i32, %arg1: i32) -> (i32, i32) {
    %c0_i32 = arith.constant 0 : i32
    %c0_i32_0 = arith.constant 0 : i32
    %c0_i32_1 = arith.constant 0 : i32
    return %c0_i32, %c0_i32_0 : i32, i32
  }
  func.func @transform_3(%arg0: i32, %arg1: i32) -> (i32, i32) {
    %c0_i32 = arith.constant 0 : i32
    %c0_i32_0 = arith.constant 0 : i32
    %c0_i32_1 = arith.constant 0 : i32
    return %c0_i32, %c0_i32_0 : i32, i32
  }
  func.func @transform_4(%arg0: i32, %arg1: i32) -> (i32, i32) {
    %c0_i32 = arith.constant 0 : i32
    %c0_i32_0 = arith.constant 0 : i32
    %c0_i32_1 = arith.constant 0 : i32
    return %c0_i32, %c0_i32_0 : i32, i32
  }
  func.func @transform_5(%arg0: i32, %arg1: i32) -> (i32, i32) {
    %c0_i32 = arith.constant 0 : i32
    %c0_i32_0 = arith.constant 0 : i32
    %c0_i32_1 = arith.constant 0 : i32
    return %c0_i32, %c0_i32_0 : i32, i32
  }
  func.func @transform_6(%arg0: i32, %arg1: i32) -> (i32, i32) {
    %c0_i32 = arith.constant 0 : i32
    %c0_i32_0 = arith.constant 0 : i32
    %c0_i32_1 = arith.constant 0 : i32
    return %c0_i32, %c0_i32_0 : i32, i32
  }
  func.func @transform_7(%arg0: i32, %arg1: i32) -> (i32, i32) {
    %c0_i32 = arith.constant 0 : i32
    %c0_i32_0 = arith.constant 0 : i32
    %c0_i32_1 = arith.constant 0 : i32
    return %c0_i32, %c0_i32_0 : i32, i32
  }
  func.func @transform_8(%arg0: i32, %arg1: i32) -> (i32, i32) {
    %c0_i32 = arith.constant 0 : i32
    %c0_i32_0 = arith.constant 0 : i32
    %c0_i32_1 = arith.constant 0 : i32
    return %c0_i32, %c0_i32_0 : i32, i32
  }
  func.func @transform_9(%arg0: i32, %arg1: i32) -> (i32, i32, i32) {
    %c0_i32 = arith.constant 0 : i32
    %c0_i32_0 = arith.constant 0 : i32
    return %arg0, %c0_i32, %arg1 : i32, i32, i32
  }
}

</mosaic_0001>

<llo_original>
// kernel: tpu_custom_call.1
$region0: #{tpu_custom_call.1}
  #allocation0 [shape = 'u32[]', space=smem, size = 0x4, offset = 0x4, fixed_abs, tag = 'smem constant byte address 0x4 - core index']
  #allocation1 [shape = 'u32[72,128]{1,0:T(1,128)}', space=vmem, size = 0x9000, scoped, tag = 'internal scratch']
  %s0 = inlined_call_operand.hbm [shape: f32[2,256,1024], index: 0, kind: input, shape index: {}]
  %s1 = inlined_call_operand.hbm [shape: bf16[256,256], index: 1, kind: input, shape index: {}]
  %s2 = inlined_call_operand.vmem [shape: f32[256,1], index: 2, kind: input, shape index: {}]
  %s3 = inlined_call_operand.hbm [shape: bf16[128,256], index: 3, kind: input, shape index: {}]
  %s4 = inlined_call_operand.vmem [shape: f32[128,1], index: 4, kind: input, shape index: {}]
  %s5 = inlined_call_operand.hbm [shape: bf16[64,128], index: 5, kind: input, shape index: {}]
  %s6 = inlined_call_operand.vmem [shape: f32[64,1], index: 6, kind: input, shape index: {}]
  %s7 = inlined_call_operand.hbm [shape: bf16[3,64], index: 7, kind: input, shape index: {}]
  %s8 = inlined_call_operand.vmem [shape: f32[3,1], index: 8, kind: input, shape index: {}]
  %s9 = inlined_call_operand.vmem [shape: f32[2,3,1024], index: 9, kind: output, shape index: {}]
  %s10 = sld [smem:[#allocation0]]
  $region89: #{tpu_custom_call.1} parent=0
    _
  %s12 = ssub.s32 1, %s10
  %s13 = scalar_select 0, %s12, %s10
  $region1: #{tpu_custom_call.1} parent=0
    #allocation2 [shape = 'u8[1048576]{0}', space=vmem, size = 0x100000, scoped, tag = 'input window, operand 0']
    #allocation3 [shape = 's32[2]{0}', space=sflag, size = 0x8, scoped, tag = 'scoped memory for tpu_custom_call.1']
    #allocation4 [shape = 'u8[131072]{0}', space=vmem, size = 0x20000, scoped, tag = 'input window, operand 1, single buffered']
    #allocation5 [shape = 's32[1]{0}', space=sflag, size = 0x4, scoped, tag = 'scoped memory for tpu_custom_call.1']
    #allocation6 [shape = 'u8[65536]{0}', space=vmem, size = 0x10000, scoped, tag = 'input window, operand 3, single buffered']
    #allocation7 [shape = 'u8[16384]{0}', space=vmem, size = 0x4000, scoped, tag = 'input window, operand 5, single buffered']
    #allocation8 [shape = 's32[1]{0}', space=sflag, size = 0x4, scoped, tag = 'scoped memory for tpu_custom_call.1']
    #allocation9 [shape = 'u8[1024]{0}', space=vmem, size = 0x400, scoped, tag = 'input window, operand 7, single buffered']
    %14 = vsyncpa [#allocation3], 0
    %s15 = scalar_lea.sflag [#allocation3], 1
    %16 = vsyncpa %s15, 0
    %17 = vsyncpa [#allocation5], 0
    %18 = vsyncpa [#allocation8], 0
    loop: start=0, step=1, limit=6
    $region2: #{tpu_custom_call.1} parent=1 // loop_pre_header
      _
    $region3: #{tpu_custom_call.1} parent=1 // loop_header
      %s20 = sphi 0, %s24
      %p21 = scmp.ge.s32.totalorder %s20, 6
      %s27 = sphi 0, %s39
      %s28 = sphi 0, %s35
      %s29 = sphi 0, %s27
      %s30 = sphi 0, %s28
      %s31 = sphi 0, %s29
      %s32 = sphi 0, %s30
      %s44 = sphi 0, %s46
      %s47 = sphi 0, %s44
      %s48 = sphi 0, %s47
      %s64 = sphi 0, %s48
      %s68 = sphi 0, %s68
      %s70 = sphi 0, %s68
      %s71 = sphi 0, %s70
      %s85 = sphi 0, %s71
      %s89 = sphi 0, %s89
      %s91 = sphi 0, %s89
      %s92 = sphi 0, %s91
      %s106 = sphi 0, %s92
      %s110 = sphi 0, %s110
      %s112 = sphi 0, %s110
      %s113 = sphi 0, %s112
      %s127 = sphi 0, %s113
      %s131 = sphi 0, %s131
      %s133 = sphi 0, %s131
      %s134 = sphi 0, %s133
      %s148 = sphi 0, %s134
      %s152 = sphi 0, %s152
      %s154 = sphi 0, %s152
      %s155 = sphi 0, %s154
      %s169 = sphi 0, %s155
      %s173 = sphi 0, %s173
      %s175 = sphi 0, %s173
      %s176 = sphi 0, %s175
      %s190 = sphi 0, %s176
      %s194 = sphi 0, %s194
      %s196 = sphi 0, %s194
      %s197 = sphi 0, %s196
      %s211 = sphi 0, %s197
      %s215 = sphi 0, %s215
      %s217 = sphi 0, %s215
      %s218 = sphi 0, %s217
      %s232 = sphi 0, %s218
      %s240 = sphi 0, %s242
      %s243 = sphi 0, %s240
      %s244 = sphi 0, %s243
      %s260 = sphi 0, %s244
    $region4: #{tpu_custom_call.1} parent=1 // loop_header_branch
      %23 = sbr.rel (%p21) target = $region8
    $region5: #{tpu_custom_call.1} parent=1 // loop_body
      %s25 = ssub.s32 %s20, 1
      %s26 = ssub.s32 %s20, 2
      %s33 = sadd.s32 1, %s28
      %p34 = scmp.ge.s32.totalorder %s33, 2
      %s35 = scalar_select %p34, 0, %s33
      %s36 = sadd.s32 1, %s27
      %s37 = scalar_select %p34, %s36, %s27
      %p38 = scmp.ge.s32.totalorder %s37, 2
      %s39 = scalar_select %p38, 0, %s37
      %s40 = ssub.s32 %s27, %s39
      %s41 = ssub.s32 %s28, %s35
      %s42 = sor.u32 %s40, %s41
      %p43 = scmp.eq.s32.totalorder %s42, 0
      %s45 = sadd.s32 %s44, 1
      %s46 = scalar_select %p43, %s44, %s45
      %p49 = pneg %p43
      %p50 = scmp.eq.s32.totalorder %s20, 3
      %p51 = por %p49, %p50
      %p52 = scmp.ne.s32.totalorder %s44, %s47
      %p53 = scmp.eq.s32.totalorder %s20, 0
      %p54 = por %p52, %p53
      %p55 = scmp.ne.s32.totalorder %s44, %s47
      %p56 = scmp.eq.s32.totalorder %s25, 3
      %p57 = por %p55, %p56
      %p58 = scmp.ne.s32.totalorder %s47, %s48
      %p59 = scmp.eq.s32.totalorder %s25, 0
      %p60 = por %p58, %p59
      %p61 = scmp.ne.s32.totalorder %s47, %s48
      %p62 = scmp.eq.s32.totalorder %s26, 3
      %p63 = por %p61, %p62
      %p65 = scmp.ne.s32.totalorder %s48, %s64
      %p66 = scmp.eq.s32.totalorder %s26, 0
      %p67 = por %p65, %p66
      %s69 = sadd.s32 %s68, 1
      %p72 = scmp.eq.s32.totalorder %s20, 3
      %p73 = scmp.ne.s32.totalorder %s68, %s70
      %p74 = scmp.eq.s32.totalorder %s20, 0
      %p75 = por %p73, %p74
      %p76 = scmp.ne.s32.totalorder %s68, %s70
      %p77 = scmp.eq.s32.totalorder %s25, 3
      %p78 = por %p76, %p77
      %p79 = scmp.ne.s32.totalorder %s70, %s71
      %p80 = scmp.eq.s32.totalorder %s25, 0
      %p81 = por %p79, %p80
      %p82 = scmp.ne.s32.totalorder %s70, %s71
      %p83 = scmp.eq.s32.totalorder %s26, 3
      %p84 = por %p82, %p83
      %p86 = scmp.ne.s32.totalorder %s71, %s85
      %p87 = scmp.eq.s32.totalorder %s26, 0
      %p88 = por %p86, %p87
      %s90 = sadd.s32 %s89, 1
      %p93 = scmp.eq.s32.totalorder %s20, 3
      %p94 = scmp.ne.s32.totalorder %s89, %s91
      %p95 = scmp.eq.s32.totalorder %s20, 0
      %p96 = por %p94, %p95
      %p97 = scmp.ne.s32.totalorder %s89, %s91
      %p98 = scmp.eq.s32.totalorder %s25, 3
      %p99 = por %p97, %p98
      %p100 = scmp.ne.s32.totalorder %s91, %s92
      %p101 = scmp.eq.s32.totalorder %s25, 0
      %p102 = por %p100, %p101
      %p103 = scmp.ne.s32.totalorder %s91, %s92
      %p104 = scmp.eq.s32.totalorder %s26, 3
      %p105 = por %p103, %p104
      %p107 = scmp.ne.s32.totalorder %s92, %s106
      %p108 = scmp.eq.s32.totalorder %s26, 0
      %p109 = por %p107, %p108
      %s111 = sadd.s32 %s110, 1
      %p114 = scmp.eq.s32.totalorder %s20, 3
      %p115 = scmp.ne.s32.totalorder %s110, %s112
      %p116 = scmp.eq.s32.totalorder %s20, 0
      %p117 = por %p115, %p116
      %p118 = scmp.ne.s32.totalorder %s110, %s112
      %p119 = scmp.eq.s32.totalorder %s25, 3
      %p120 = por %p118, %p119
      %p121 = scmp.ne.s32.totalorder %s112, %s113
      %p122 = scmp.eq.s32.totalorder %s25, 0
      %p123 = por %p121, %p122
      %p124 = scmp.ne.s32.totalorder %s112, %s113
      %p125 = scmp.eq.s32.totalorder %s26, 3
      %p126 = por %p124, %p125
      %p128 = scmp.ne.s32.totalorder %s113, %s127
      %p129 = scmp.eq.s32.totalorder %s26, 0
      %p130 = por %p128, %p129
      %s132 = sadd.s32 %s131, 1
      %p135 = scmp.eq.s32.totalorder %s20, 3
      %p136 = scmp.ne.s32.totalorder %s131, %s133
      %p137 = scmp.eq.s32.totalorder %s20, 0
      %p138 = por %p136, %p137
      %p139 = scmp.ne.s32.totalorder %s131, %s133
      %p140 = scmp.eq.s32.totalorder %s25, 3
      %p141 = por %p139, %p140
      %p142 = scmp.ne.s32.totalorder %s133, %s134
      %p143 = scmp.eq.s32.totalorder %s25, 0
      %p144 = por %p142, %p143
      %p145 = scmp.ne.s32.totalorder %s133, %s134
      %p146 = scmp.eq.s32.totalorder %s26, 3
      %p147 = por %p145, %p146
      %p149 = scmp.ne.s32.totalorder %s134, %s148
      %p150 = scmp.eq.s32.totalorder %s26, 0
      %p151 = por %p149, %p150
      %s153 = sadd.s32 %s152, 1
      %p156 = scmp.eq.s32.totalorder %s20, 3
      %p157 = scmp.ne.s32.totalorder %s152, %s154
      %p158 = scmp.eq.s32.totalorder %s20, 0
      %p159 = por %p157, %p158
      %p160 = scmp.ne.s32.totalorder %s152, %s154
      %p161 = scmp.eq.s32.totalorder %s25, 3
      %p162 = por %p160, %p161
      %p163 = scmp.ne.s32.totalorder %s154, %s155
      %p164 = scmp.eq.s32.totalorder %s25, 0
      %p165 = por %p163, %p164
      %p166 = scmp.ne.s32.totalorder %s154, %s155
      %p167 = scmp.eq.s32.totalorder %s26, 3
      %p168 = por %p166, %p167
      %p170 = scmp.ne.s32.totalorder %s155, %s169
      %p171 = scmp.eq.s32.totalorder %s26, 0
      %p172 = por %p170, %p171
      %s174 = sadd.s32 %s173, 1
      %p177 = scmp.eq.s32.totalorder %s20, 3
      %p178 = scmp.ne.s32.totalorder %s173, %s175
      %p179 = scmp.eq.s32.totalorder %s20, 0
      %p180 = por %p178, %p179
      %p181 = scmp.ne.s32.totalorder %s173, %s175
      %p182 = scmp.eq.s32.totalorder %s25, 3
      %p183 = por %p181, %p182
      %p184 = scmp.ne.s32.totalorder %s175, %s176
      %p185 = scmp.eq.s32.totalorder %s25, 0
      %p186 = por %p184, %p185
      %p187 = scmp.ne.s32.totalorder %s175, %s176
      %p188 = scmp.eq.s32.totalorder %s26, 3
      %p189 = por %p187, %p188
      %p191 = scmp.ne.s32.totalorder %s176, %s190
      %p192 = scmp.eq.s32.totalorder %s26, 0
      %p193 = por %p191, %p192
      %s195 = sadd.s32 %s194, 1
      %p198 = scmp.eq.s32.totalorder %s20, 3
      %p199 = scmp.ne.s32.totalorder %s194, %s196
      %p200 = scmp.eq.s32.totalorder %s20, 0
      %p201 = por %p199, %p200
      %p202 = scmp.ne.s32.totalorder %s194, %s196
      %p203 = scmp.eq.s32.totalorder %s25, 3
      %p204 = por %p202, %p203
      %p205 = scmp.ne.s32.totalorder %s196, %s197
      %p206 = scmp.eq.s32.totalorder %s25, 0
      %p207 = por %p205, %p206
      %p208 = scmp.ne.s32.totalorder %s196, %s197
      %p209 = scmp.eq.s32.totalorder %s26, 3
      %p210 = por %p208, %p209
      %p212 = scmp.ne.s32.totalorder %s197, %s211
      %p213 = scmp.eq.s32.totalorder %s26, 0
      %p214 = por %p212, %p213
      %s216 = sadd.s32 %s215, 1
      %p219 = scmp.eq.s32.totalorder %s20, 3
      %p220 = scmp.ne.s32.totalorder %s215, %s217
      %p221 = scmp.eq.s32.totalorder %s20, 0
      %p222 = por %p220, %p221
      %p223 = scmp.ne.s32.totalorder %s215, %s217
      %p224 = scmp.eq.s32.totalorder %s25, 3
      %p225 = por %p223, %p224
      %p226 = scmp.ne.s32.totalorder %s217, %s218
      %p227 = scmp.eq.s32.totalorder %s25, 0
      %p228 = por %p226, %p227
      %p229 = scmp.ne.s32.totalorder %s217, %s218
      %p230 = scmp.eq.s32.totalorder %s26, 3
      %p231 = por %p229, %p230
      %p233 = scmp.ne.s32.totalorder %s218, %s232
      %p234 = scmp.eq.s32.totalorder %s26, 0
      %p235 = por %p233, %p234
      %s236 = ssub.s32 %s27, %s39
      %s237 = ssub.s32 %s28, %s35
      %s238 = sor.u32 %s236, %s237
      %p239 = scmp.eq.s32.totalorder %s238, 0
      %s241 = sadd.s32 %s240, 1
      %s242 = scalar_select %p239, %s240, %s241
      %p245 = pneg %p239
      %p246 = scmp.eq.s32.totalorder %s20, 3
      %p247 = por %p245, %p246
      %p248 = scmp.ne.s32.totalorder %s240, %s243
      %p249 = scmp.eq.s32.totalorder %s20, 0
      %p250 = por %p248, %p249
      %p251 = scmp.ne.s32.totalorder %s240, %s243
      %p252 = scmp.eq.s32.totalorder %s25, 3
      %p253 = por %p251, %p252
      %p254 = scmp.ne.s32.totalorder %s243, %s244
      %p255 = scmp.eq.s32.totalorder %s25, 0
      %p256 = por %p254, %p255
      %p257 = scmp.ne.s32.totalorder %s243, %s244
      %p258 = scmp.eq.s32.totalorder %s26, 3
      %p259 = por %p257, %p258
      %p261 = scmp.ne.s32.totalorder %s244, %s260
      %p262 = scmp.eq.s32.totalorder %s26, 0
      %p263 = por %p261, %p262
      %p264 = scmp.le.s32.totalorder 1, %s20
      %p265 = scmp.lt.s32.totalorder %s20, 5
      %p266 = pnand %p264, %p265
      %p267 = pneg %p266
      // Predicated region
      $region9: #{tpu_custom_call.1} parent=5 // pred_check
        _
      $region10: #{tpu_custom_call.1} parent=5 // pred_check_branch
        %269 = sbr.rel (%p266) target = $region12
      $region11: #{tpu_custom_call.1} parent=5 // pred_region
        %s270 = ssub.s32 %s20, 1
        // Predicated region
        $region13: #{tpu_custom_call.1} parent=11 // pred_check
          %p271 = pneg %p81
        $region14: #{tpu_custom_call.1} parent=11 // pred_check_branch
          %273 = sbr.rel (%p271) target = $region16
        $region15: #{tpu_custom_call.1} parent=11 // pred_region
          %275 = vsyncadd [#allocation5], 0
          %s276 = sshll.u32 %s1, 4
          %s277 = int_to_ptr.hbm [resolvable:$true] %s276
          %s278 = sshll.u32 [#allocation4], 4
          %s279 = int_to_ptr.vmem [resolvable:$true] %s278
          %284 = dma.hbm_to_vmem [thread:$0]  %s277, 4096, %s279, [#allocation5], 128, 128, 8
        $region16: #{tpu_custom_call.1} parent=11 // pred_fallthru
          _
        // Predicated region
        $region17: #{tpu_custom_call.1} parent=11 // pred_check
          %p285 = pneg %p102
        $region18: #{tpu_custom_call.1} parent=11 // pred_check_branch
          %287 = sbr.rel (%p285) target = $region20
        $region19: #{tpu_custom_call.1} parent=11 // pred_region
          _
        $region20: #{tpu_custom_call.1} parent=11 // pred_fallthru
          _
        // Predicated region
        $region21: #{tpu_custom_call.1} parent=11 // pred_check
          %p288 = pneg %p123
        $region22: #{tpu_custom_call.1} parent=11 // pred_check_branch
          %290 = sbr.rel (%p288) target = $region24
        $region23: #{tpu_custom_call.1} parent=11 // pred_region
          %292 = vsyncadd [#allocation5], 0
          %s293 = sshll.u32 %s3, 4
          %s294 = int_to_ptr.hbm [resolvable:$true] %s293
          %s295 = sshll.u32 [#allocation6], 4
          %s296 = int_to_ptr.vmem [resolvable:$true] %s295
          %301 = dma.hbm_to_vmem [thread:$0]  %s294, 2048, %s296, [#allocation5], 128, 128, 8
        $region24: #{tpu_custom_call.1} parent=11 // pred_fallthru
          _
        // Predicated region
        $region25: #{tpu_custom_call.1} parent=11 // pred_check
          %p302 = pneg %p144
        $region26: #{tpu_custom_call.1} parent=11 // pred_check_branch
          %304 = sbr.rel (%p302) target = $region28
        $region27: #{tpu_custom_call.1} parent=11 // pred_region
          _
        $region28: #{tpu_custom_call.1} parent=11 // pred_fallthru
          _
        // Predicated region
        $region29: #{tpu_custom_call.1} parent=11 // pred_check
          %p305 = pneg %p165
        $region30: #{tpu_custom_call.1} parent=11 // pred_check_branch
          %307 = sbr.rel (%p305) target = $region32
        $region31: #{tpu_custom_call.1} parent=11 // pred_region
          %309 = vsyncadd [#allocation8], 0
          %s310 = sshll.u32 %s5, 4
          %s311 = int_to_ptr.hbm [resolvable:$true] %s310
          %s312 = sshll.u32 [#allocation7], 4
          %s313 = int_to_ptr.vmem [resolvable:$true] %s312
          %318 = dma.hbm_to_vmem [thread:$0]  %s311, 512, %s313, [#allocation8], 64, 64, 4
        $region32: #{tpu_custom_call.1} parent=11 // pred_fallthru
          _
        // Predicated region
        $region33: #{tpu_custom_call.1} parent=11 // pred_check
          %p319 = pneg %p186
        $region34: #{tpu_custom_call.1} parent=11 // pred_check_branch
          %321 = sbr.rel (%p319) target = $region36
        $region35: #{tpu_custom_call.1} parent=11 // pred_region
          _
        $region36: #{tpu_custom_call.1} parent=11 // pred_fallthru
          _
        // Predicated region
        $region37: #{tpu_custom_call.1} parent=11 // pred_check
          %p322 = pneg %p207
        $region38: #{tpu_custom_call.1} parent=11 // pred_check_branch
          %324 = sbr.rel (%p322) target = $region40
        $region39: #{tpu_custom_call.1} parent=11 // pred_region
          %326 = vsyncadd [#allocation8], 0
          %s328 = sshll.u32 %s7, 4
          %s329 = int_to_ptr.hbm [resolvable:$true] %s328
          %s330 = sshll.u32 [#allocation9], 4
          %s331 = int_to_ptr.vmem [resolvable:$true] %s330
          %333 = dma.hbm_to_vmem [thread:$0]  %s329, 32, %s331, [#allocation8]
        $region40: #{tpu_custom_call.1} parent=11 // pred_fallthru
          _
        // Predicated region
        $region41: #{tpu_custom_call.1} parent=11 // pred_check
          %p334 = pneg %p228
        $region42: #{tpu_custom_call.1} parent=11 // pred_check_branch
          %336 = sbr.rel (%p334) target = $region44
        $region43: #{tpu_custom_call.1} parent=11 // pred_region
          _
        $region44: #{tpu_custom_call.1} parent=11 // pred_fallthru
          _
      $region12: #{tpu_custom_call.1} parent=5 // pred_fallthru
        _
      %p337 = scmp.lt.s32.totalorder %s20, 4
      // Predicated region
      $region45: #{tpu_custom_call.1} parent=5 // pred_check
        %p338 = pneg %p337
      $region46: #{tpu_custom_call.1} parent=5 // pred_check_branch
        %340 = sbr.rel (%p338) target = $region48
      $region47: #{tpu_custom_call.1} parent=5 // pred_region
        // Predicated region
        $region49: #{tpu_custom_call.1} parent=47 // pred_check
          %p341 = pneg %p54
        $region50: #{tpu_custom_call.1} parent=47 // pred_check_branch
          %343 = sbr.rel (%p341) target = $region52
        $region51: #{tpu_custom_call.1} parent=47 // pred_region
          %s344 = sand.u32 %s44, 1
          %s345 = scalar_lea.sflag [#allocation3], %s344
          %s346 = sand.u32 %s44, 1
          %s347 = smul.addr %s346, 1024
          %s348 = scalar_lea.vmem [#allocation2], %s347
          %s349 = smul.u32 4, %s28
          %351 = vsyncadd %s345, 0
          %s352 = smul.addr %s27, 256
          %s353 = sadd.s32 %s349, %s352
          %s354 = smul.addr %s353, 8
          %s355 = scalar_lea.hbm %s0, %s354
          %s356 = sshll.u32 %s355, 4
          %s357 = int_to_ptr.hbm [resolvable:$true] %s356
          %s358 = sshll.u32 %s348, 4
          %s359 = int_to_ptr.vmem [resolvable:$true] %s358
          %364 = dma.hbm_to_vmem [thread:$0]  %s357, 16384, %s359, %s345, 1024, 512, 32
        $region52: #{tpu_custom_call.1} parent=47 // pred_fallthru
          _
      $region48: #{tpu_custom_call.1} parent=5 // pred_fallthru
        _
      %p365 = scmp.le.s32.totalorder 1, %s20
      %p366 = scmp.lt.s32.totalorder %s20, 5
      %p367 = pnand %p365, %p366
      %p368 = pneg %p367
      // Predicated region
      $region53: #{tpu_custom_call.1} parent=5 // pred_check
        _
      $region54: #{tpu_custom_call.1} parent=5 // pred_check_branch
        %370 = sbr.rel (%p367) target = $region56
      $region55: #{tpu_custom_call.1} parent=5 // pred_region
        %s371 = ssub.s32 %s20, 1
        %s372 = sand.u32 %s47, 1
        %s373 = scalar_lea.sflag [#allocation3], %s372
        %s374 = sand.u32 %s47, 1
        %s375 = smul.addr %s374, 1024
        %s376 = scalar_lea.vmem [#allocation2], %s375
        // Predicated region
        $region57: #{tpu_custom_call.1} parent=55 // pred_check
          %p377 = pneg %p60
        $region58: #{tpu_custom_call.1} parent=55 // pred_check_branch
          %379 = sbr.rel (%p377) target = $region60
        $region59: #{tpu_custom_call.1} parent=55 // pred_region
          %381 = dma.done %s373, 16384
        $region60: #{tpu_custom_call.1} parent=55 // pred_fallthru
          _
        // Predicated region
        $region61: #{tpu_custom_call.1} parent=55 // pred_check
          %p382 = pneg %p81
        $region62: #{tpu_custom_call.1} parent=55 // pred_check_branch
          %384 = sbr.rel (%p382) target = $region64
        $region63: #{tpu_custom_call.1} parent=55 // pred_region
          %386 = dma.done [#allocation5], 4096
        $region64: #{tpu_custom_call.1} parent=55 // pred_fallthru
          _
        // Predicated region
        $region65: #{tpu_custom_call.1} parent=55 // pred_check
          %p387 = pneg %p123
        $region66: #{tpu_custom_call.1} parent=55 // pred_check_branch
          %389 = sbr.rel (%p387) target = $region68
        $region67: #{tpu_custom_call.1} parent=55 // pred_region
          %391 = dma.done [#allocation5], 2048
        $region68: #{tpu_custom_call.1} parent=55 // pred_fallthru
          _
        // Predicated region
        $region69: #{tpu_custom_call.1} parent=55 // pred_check
          %p392 = pneg %p165
        $region70: #{tpu_custom_call.1} parent=55 // pred_check_branch
          %394 = sbr.rel (%p392) target = $region72
        $region71: #{tpu_custom_call.1} parent=55 // pred_region
          %396 = dma.done [#allocation8], 512
        $region72: #{tpu_custom_call.1} parent=55 // pred_fallthru
          _
        // Predicated region
        $region73: #{tpu_custom_call.1} parent=55 // pred_check
          %p397 = pneg %p207
        $region74: #{tpu_custom_call.1} parent=55 // pred_check_branch
          %399 = sbr.rel (%p397) target = $region76
        $region75: #{tpu_custom_call.1} parent=55 // pred_region
          %401 = dma.done [#allocation8], 32
        $region76: #{tpu_custom_call.1} parent=55 // pred_fallthru
          _
        %s402 = sand.u32 %s47, 1
        %s403 = scalar_lea.sflag [#allocation3], %s402
        %s404 = sand.u32 %s47, 1
        %s405 = smul.addr %s404, 1024
        %s406 = scalar_lea.vmem [#allocation2], %s405
        %p407 = pneg %p60
        %p408 = pneg %p57
        %p409 = pneg %p81
        %p410 = pneg %p78
        %p411 = pneg %p102
        %p412 = pneg %p99
        %p413 = pneg %p123
        %p414 = pneg %p120
        %p415 = pneg %p144
        %p416 = pneg %p141
        %p417 = pneg %p165
        %p418 = pneg %p162
        %p419 = pneg %p186
        %p420 = pneg %p183
        %p421 = pneg %p207
        %p422 = pneg %p204
        %p423 = pneg %p228
        %p424 = pneg %p225
        %p425 = pneg %p256
        %p426 = pneg %p253
        %s427 = smul.u32 4, %s30
        %p428 = scmp.lt.s32.totalorder %s29, 1
        %s429 = scalar_select %p428, %s29, 1
        %p430 = scmp.lt.s32.totalorder %s427, 7
        %s431 = scalar_select %p430, %s427, 7
        %s432 = smul.addr %s429, 8
        %s433 = sadd.s32 %s431, %s432
        %s434 = smul.addr %s433, 4
        %s435 = scalar_lea.vmem %s9, %s434
        %s436 = smul.u32 4, %s30
        %s437 = smul.u32 4, %s30
        %p438 = scmp.lt.s32.totalorder %s29, 1
        %s439 = scalar_select %p438, %s29, 1
        %p440 = scmp.lt.s32.totalorder %s437, 7
        %s441 = scalar_select %p440, %s437, 7
        %s442 = smul.addr %s439, 8
        %s443 = sadd.s32 %s441, %s442
        %s444 = smul.addr %s443, 4
        %s445 = scalar_lea.vmem %s9, %s444
        %s446 = smul.u32 4, %s30
        %v448 = vld [vmem:[%s376] sm:$0xff]
        %v449 = vld [vmem:[%s376 + $0x8] sm:$0xff]
        %v450 = vld [vmem:[%s376 + $0x10] sm:$0xff]
        %v451 = vld [vmem:[%s376 + $0x18] sm:$0xff]
        %v452 = vld [vmem:[%s376 + $0x20] sm:$0xff]
        %v453 = vld [vmem:[%s376 + $0x28] sm:$0xff]
        %v454 = vld [vmem:[%s376 + $0x30] sm:$0xff]
        %v455 = vld [vmem:[%s376 + $0x38] sm:$0xff]
        %v456 = vld [vmem:[%s376 + $0x40] sm:$0xff]
        %v457 = vld [vmem:[%s376 + $0x48] sm:$0xff]
        %v458 = vld [vmem:[%s376 + $0x50] sm:$0xff]
        %v459 = vld [vmem:[%s376 + $0x58] sm:$0xff]
        %v460 = vld [vmem:[%s376 + $0x60] sm:$0xff]
        %v461 = vld [vmem:[%s376 + $0x68] sm:$0xff]
        %v462 = vld [vmem:[%s376 + $0x70] sm:$0xff]
        %v463 = vld [vmem:[%s376 + $0x78] sm:$0xff]
        %v464 = vld [vmem:[%s376 + $0x80] sm:$0xff]
        %v465 = vld [vmem:[%s376 + $0x88] sm:$0xff]
        %v466 = vld [vmem:[%s376 + $0x90] sm:$0xff]
        %v467 = vld [vmem:[%s376 + $0x98] sm:$0xff]
        %v468 = vld [vmem:[%s376 + $0xa0] sm:$0xff]
        %v469 = vld [vmem:[%s376 + $0xa8] sm:$0xff]
        %v470 = vld [vmem:[%s376 + $0xb0] sm:$0xff]
        %v471 = vld [vmem:[%s376 + $0xb8] sm:$0xff]
        %v472 = vld [vmem:[%s376 + $0xc0] sm:$0xff]
        %v473 = vld [vmem:[%s376 + $0xc8] sm:$0xff]
        %v474 = vld [vmem:[%s376 + $0xd0] sm:$0xff]
        %v475 = vld [vmem:[%s376 + $0xd8] sm:$0xff]
        %v476 = vld [vmem:[%s376 + $0xe0] sm:$0xff]
        %v477 = vld [vmem:[%s376 + $0xe8] sm:$0xff]
        %v478 = vld [vmem:[%s376 + $0xf0] sm:$0xff]
        %v479 = vld [vmem:[%s376 + $0xf8] sm:$0xff]
        %v480 = vld [vmem:[%s376 + $0x100] sm:$0xff]
        %v481 = vld [vmem:[%s376 + $0x108] sm:$0xff]
        %v482 = vld [vmem:[%s376 + $0x110] sm:$0xff]
        %v483 = vld [vmem:[%s376 + $0x118] sm:$0xff]
        %v484 = vld [vmem:[%s376 + $0x120] sm:$0xff]
        %v485 = vld [vmem:[%s376 + $0x128] sm:$0xff]
        %v486 = vld [vmem:[%s376 + $0x130] sm:$0xff]
        %v487 = vld [vmem:[%s376 + $0x138] sm:$0xff]
        %v488 = vld [vmem:[%s376 + $0x140] sm:$0xff]
        %v489 = vld [vmem:[%s376 + $0x148] sm:$0xff]
        %v490 = vld [vmem:[%s376 + $0x150] sm:$0xff]
        %v491 = vld [vmem:[%s376 + $0x158] sm:$0xff]
        %v492 = vld [vmem:[%s376 + $0x160] sm:$0xff]
        %v493 = vld [vmem:[%s376 + $0x168] sm:$0xff]
        %v494 = vld [vmem:[%s376 + $0x170] sm:$0xff]
        %v495 = vld [vmem:[%s376 + $0x178] sm:$0xff]
        %v496 = vld [vmem:[%s376 + $0x180] sm:$0xff]
        %v497 = vld [vmem:[%s376 + $0x188] sm:$0xff]
        %v498 = vld [vmem:[%s376 + $0x190] sm:$0xff]
        %v499 = vld [vmem:[%s376 + $0x198] sm:$0xff]
        %v500 = vld [vmem:[%s376 + $0x1a0] sm:$0xff]
        %v501 = vld [vmem:[%s376 + $0x1a8] sm:$0xff]
        %v502 = vld [vmem:[%s376 + $0x1b0] sm:$0xff]
        %v503 = vld [vmem:[%s376 + $0x1b8] sm:$0xff]
        %v504 = vld [vmem:[%s376 + $0x1c0] sm:$0xff]
        %v505 = vld [vmem:[%s376 + $0x1c8] sm:$0xff]
        %v506 = vld [vmem:[%s376 + $0x1d0] sm:$0xff]
        %v507 = vld [vmem:[%s376 + $0x1d8] sm:$0xff]
        %v508 = vld [vmem:[%s376 + $0x1e0] sm:$0xff]
        %v509 = vld [vmem:[%s376 + $0x1e8] sm:$0xff]
        %v510 = vld [vmem:[%s376 + $0x1f0] sm:$0xff]
        %v511 = vld [vmem:[%s376 + $0x1f8] sm:$0xff]
        %v512 = vld [vmem:[%s376 + $0x200] sm:$0xff]
        %v513 = vld [vmem:[%s376 + $0x208] sm:$0xff]
        %v514 = vld [vmem:[%s376 + $0x210] sm:$0xff]
        %v515 = vld [vmem:[%s376 + $0x218] sm:$0xff]
        %v516 = vld [vmem:[%s376 + $0x220] sm:$0xff]
        %v517 = vld [vmem:[%s376 + $0x228] sm:$0xff]
        %v518 = vld [vmem:[%s376 + $0x230] sm:$0xff]
        %v519 = vld [vmem:[%s376 + $0x238] sm:$0xff]
        %v520 = vld [vmem:[%s376 + $0x240] sm:$0xff]
        %v521 = vld [vmem:[%s376 + $0x248] sm:$0xff]
        %v522 = vld [vmem:[%s376 + $0x250] sm:$0xff]
        %v523 = vld [vmem:[%s376 + $0x258] sm:$0xff]
        %v524 = vld [vmem:[%s376 + $0x260] sm:$0xff]
        %v525 = vld [vmem:[%s376 + $0x268] sm:$0xff]
        %v526 = vld [vmem:[%s376 + $0x270] sm:$0xff]
        %v527 = vld [vmem:[%s376 + $0x278] sm:$0xff]
        %v528 = vld [vmem:[%s376 + $0x280] sm:$0xff]
        %v529 = vld [vmem:[%s376 + $0x288] sm:$0xff]
        %v530 = vld [vmem:[%s376 + $0x290] sm:$0xff]
        %v531 = vld [vmem:[%s376 + $0x298] sm:$0xff]
        %v532 = vld [vmem:[%s376 + $0x2a0] sm:$0xff]
        %v533 = vld [vmem:[%s376 + $0x2a8] sm:$0xff]
        %v534 = vld [vmem:[%s376 + $0x2b0] sm:$0xff]
        %v535 = vld [vmem:[%s376 + $0x2b8] sm:$0xff]
        %v536 = vld [vmem:[%s376 + $0x2c0] sm:$0xff]
        %v537 = vld [vmem:[%s376 + $0x2c8] sm:$0xff]
        %v538 = vld [vmem:[%s376 + $0x2d0] sm:$0xff]
        %v539 = vld [vmem:[%s376 + $0x2d8] sm:$0xff]
        %v540 = vld [vmem:[%s376 + $0x2e0] sm:$0xff]
        %v541 = vld [vmem:[%s376 + $0x2e8] sm:$0xff]
        %v542 = vld [vmem:[%s376 + $0x2f0] sm:$0xff]
        %v543 = vld [vmem:[%s376 + $0x2f8] sm:$0xff]
        %v544 = vld [vmem:[%s376 + $0x300] sm:$0xff]
        %v545 = vld [vmem:[%s376 + $0x308] sm:$0xff]
        %v546 = vld [vmem:[%s376 + $0x310] sm:$0xff]
        %v547 = vld [vmem:[%s376 + $0x318] sm:$0xff]
        %v548 = vld [vmem:[%s376 + $0x320] sm:$0xff]
        %v549 = vld [vmem:[%s376 + $0x328] sm:$0xff]
        %v550 = vld [vmem:[%s376 + $0x330] sm:$0xff]
        %v551 = vld [vmem:[%s376 + $0x338] sm:$0xff]
        %v552 = vld [vmem:[%s376 + $0x340] sm:$0xff]
        %v553 = vld [vmem:[%s376 + $0x348] sm:$0xff]
        %v554 = vld [vmem:[%s376 + $0x350] sm:$0xff]
        %v555 = vld [vmem:[%s376 + $0x358] sm:$0xff]
        %v556 = vld [vmem:[%s376 + $0x360] sm:$0xff]
        %v557 = vld [vmem:[%s376 + $0x368] sm:$0xff]
        %v558 = vld [vmem:[%s376 + $0x370] sm:$0xff]
        %v559 = vld [vmem:[%s376 + $0x378] sm:$0xff]
        %v560 = vld [vmem:[%s376 + $0x380] sm:$0xff]
        %v561 = vld [vmem:[%s376 + $0x388] sm:$0xff]
        %v562 = vld [vmem:[%s376 + $0x390] sm:$0xff]
        %v563 = vld [vmem:[%s376 + $0x398] sm:$0xff]
        %v564 = vld [vmem:[%s376 + $0x3a0] sm:$0xff]
        %v565 = vld [vmem:[%s376 + $0x3a8] sm:$0xff]
        %v566 = vld [vmem:[%s376 + $0x3b0] sm:$0xff]
        %v567 = vld [vmem:[%s376 + $0x3b8] sm:$0xff]
        %v568 = vld [vmem:[%s376 + $0x3c0] sm:$0xff]
        %v569 = vld [vmem:[%s376 + $0x3c8] sm:$0xff]
        %v570 = vld [vmem:[%s376 + $0x3d0] sm:$0xff]
        %v571 = vld [vmem:[%s376 + $0x3d8] sm:$0xff]
        %v572 = vld [vmem:[%s376 + $0x3e0] sm:$0xff]
        %v573 = vld [vmem:[%s376 + $0x3e8] sm:$0xff]
        %v574 = vld [vmem:[%s376 + $0x3f0] sm:$0xff]
        %v575 = vld [vmem:[%s376 + $0x3f8] sm:$0xff]
        %v576 = vpack.c.bf16 %v452, %v448
        %v577 = vpack.c.bf16 %v453, %v449
        %v578 = vpack.c.bf16 %v454, %v450
        %v579 = vpack.c.bf16 %v455, %v451
        %v580 = vpack.c.bf16 %v460, %v456
        %v581 = vpack.c.bf16 %v461, %v457
        %v582 = vpack.c.bf16 %v462, %v458
        %v583 = vpack.c.bf16 %v463, %v459
        %v584 = vpack.c.bf16 %v468, %v464
        %v585 = vpack.c.bf16 %v469, %v465
        %v586 = vpack.c.bf16 %v470, %v466
        %v587 = vpack.c.bf16 %v471, %v467
        %v588 = vpack.c.bf16 %v476, %v472
        %v589 = vpack.c.bf16 %v477, %v473
        %v590 = vpack.c.bf16 %v478, %v474
        %v591 = vpack.c.bf16 %v479, %v475
        %v592 = vpack.c.bf16 %v484, %v480
        %v593 = vpack.c.bf16 %v485, %v481
        %v594 = vpack.c.bf16 %v486, %v482
        %v595 = vpack.c.bf16 %v487, %v483
        %v596 = vpack.c.bf16 %v492, %v488
        %v597 = vpack.c.bf16 %v493, %v489
        %v598 = vpack.c.bf16 %v494, %v490
        %v599 = vpack.c.bf16 %v495, %v491
        %v600 = vpack.c.bf16 %v500, %v496
        %v601 = vpack.c.bf16 %v501, %v497
        %v602 = vpack.c.bf16 %v502, %v498
        %v603 = vpack.c.bf16 %v503, %v499
        %v604 = vpack.c.bf16 %v508, %v504
        %v605 = vpack.c.bf16 %v509, %v505
        %v606 = vpack.c.bf16 %v510, %v506
        %v607 = vpack.c.bf16 %v511, %v507
        %v608 = vpack.c.bf16 %v516, %v512
        %v609 = vpack.c.bf16 %v517, %v513
        %v610 = vpack.c.bf16 %v518, %v514
        %v611 = vpack.c.bf16 %v519, %v515
        %v612 = vpack.c.bf16 %v524, %v520
        %v613 = vpack.c.bf16 %v525, %v521
        %v614 = vpack.c.bf16 %v526, %v522
        %v615 = vpack.c.bf16 %v527, %v523
        %v616 = vpack.c.bf16 %v532, %v528
        %v617 = vpack.c.bf16 %v533, %v529
        %v618 = vpack.c.bf16 %v534, %v530
        %v619 = vpack.c.bf16 %v535, %v531
        %v620 = vpack.c.bf16 %v540, %v536
        %v621 = vpack.c.bf16 %v541, %v537
        %v622 = vpack.c.bf16 %v542, %v538
        %v623 = vpack.c.bf16 %v543, %v539
        %v624 = vpack.c.bf16 %v548, %v544
        %v625 = vpack.c.bf16 %v549, %v545
        %v626 = vpack.c.bf16 %v550, %v546
        %v627 = vpack.c.bf16 %v551, %v547
        %v628 = vpack.c.bf16 %v556, %v552
        %v629 = vpack.c.bf16 %v557, %v553
        %v630 = vpack.c.bf16 %v558, %v554
        %v631 = vpack.c.bf16 %v559, %v555
        %v632 = vpack.c.bf16 %v564, %v560
        %v633 = vpack.c.bf16 %v565, %v561
        %v634 = vpack.c.bf16 %v566, %v562
        %v635 = vpack.c.bf16 %v567, %v563
        %v636 = vpack.c.bf16 %v572, %v568
        %v637 = vpack.c.bf16 %v573, %v569
        %v638 = vpack.c.bf16 %v574, %v570
        %v639 = vpack.c.bf16 %v575, %v571
        %v640 = vld [vmem:[#allocation4] sm:$0xff]
        %v641 = vld [vmem:[#allocation4 + $0x8] sm:$0xff]
        %v642 = vld [vmem:[#allocation4 + $0x10] sm:$0xff]
        %v643 = vld [vmem:[#allocation4 + $0x18] sm:$0xff]
        %v644 = vld [vmem:[#allocation4 + $0x20] sm:$0xff]
        %v645 = vld [vmem:[#allocation4 + $0x28] sm:$0xff]
        %v646 = vld [vmem:[#allocation4 + $0x30] sm:$0xff]
        %v647 = vld [vmem:[#allocation4 + $0x38] sm:$0xff]
        %v648 = vld [vmem:[#allocation4 + $0x40] sm:$0xff]
        %v649 = vld [vmem:[#allocation4 + $0x48] sm:$0xff]
        %v650 = vld [vmem:[#allocation4 + $0x50] sm:$0xff]
        %v651 = vld [vmem:[#allocation4 + $0x58] sm:$0xff]
        %v652 = vld [vmem:[#allocation4 + $0x60] sm:$0xff]
        %v653 = vld [vmem:[#allocation4 + $0x68] sm:$0xff]
        %v654 = vld [vmem:[#allocation4 + $0x70] sm:$0xff]
        %v655 = vld [vmem:[#allocation4 + $0x78] sm:$0xff]
        %v656 = vld [vmem:[#allocation4 + $0x80] sm:$0xff]
        %v657 = vld [vmem:[#allocation4 + $0x88] sm:$0xff]
        %v658 = vld [vmem:[#allocation4 + $0x90] sm:$0xff]
        %v659 = vld [vmem:[#allocation4 + $0x98] sm:$0xff]
        %v660 = vld [vmem:[#allocation4 + $0xa0] sm:$0xff]
        %v661 = vld [vmem:[#allocation4 + $0xa8] sm:$0xff]
        %v662 = vld [vmem:[#allocation4 + $0xb0] sm:$0xff]
        %v663 = vld [vmem:[#allocation4 + $0xb8] sm:$0xff]
        %v664 = vld [vmem:[#allocation4 + $0xc0] sm:$0xff]
        %v665 = vld [vmem:[#allocation4 + $0xc8] sm:$0xff]
        %v666 = vld [vmem:[#allocation4 + $0xd0] sm:$0xff]
        %v667 = vld [vmem:[#allocation4 + $0xd8] sm:$0xff]
        %v668 = vld [vmem:[#allocation4 + $0xe0] sm:$0xff]
        %v669 = vld [vmem:[#allocation4 + $0xe8] sm:$0xff]
        %v670 = vld [vmem:[#allocation4 + $0xf0] sm:$0xff]
        %v671 = vld [vmem:[#allocation4 + $0xf8] sm:$0xff]
        %v672 = vld [vmem:[%s2] sm:$0xff]
        %v673 = vld [vmem:[%s2 + $0x8] sm:$0xff]
        %v674 = vld [vmem:[%s2 + $0x10] sm:$0xff]
        %v675 = vld [vmem:[%s2 + $0x18] sm:$0xff]
        %v676 = vld [vmem:[%s2 + $0x20] sm:$0xff]
        %v677 = vld [vmem:[%s2 + $0x28] sm:$0xff]
        %v678 = vld [vmem:[%s2 + $0x30] sm:$0xff]
        %v679 = vld [vmem:[%s2 + $0x38] sm:$0xff]
        %v680 = vld [vmem:[%s2 + $0x40] sm:$0xff]
        %v681 = vld [vmem:[%s2 + $0x48] sm:$0xff]
        %v682 = vld [vmem:[%s2 + $0x50] sm:$0xff]
        %v683 = vld [vmem:[%s2 + $0x58] sm:$0xff]
        %v684 = vld [vmem:[%s2 + $0x60] sm:$0xff]
        %v685 = vld [vmem:[%s2 + $0x68] sm:$0xff]
        %v686 = vld [vmem:[%s2 + $0x70] sm:$0xff]
        %v687 = vld [vmem:[%s2 + $0x78] sm:$0xff]
        %v688 = vld [vmem:[%s2 + $0x80] sm:$0xff]
        %v689 = vld [vmem:[%s2 + $0x88] sm:$0xff]
        %v690 = vld [vmem:[%s2 + $0x90] sm:$0xff]
        %v691 = vld [vmem:[%s2 + $0x98] sm:$0xff]
        %v692 = vld [vmem:[%s2 + $0xa0] sm:$0xff]
        %v693 = vld [vmem:[%s2 + $0xa8] sm:$0xff]
        %v694 = vld [vmem:[%s2 + $0xb0] sm:$0xff]
        %v695 = vld [vmem:[%s2 + $0xb8] sm:$0xff]
        %v696 = vld [vmem:[%s2 + $0xc0] sm:$0xff]
        %v697 = vld [vmem:[%s2 + $0xc8] sm:$0xff]
        %v698 = vld [vmem:[%s2 + $0xd0] sm:$0xff]
        %v699 = vld [vmem:[%s2 + $0xd8] sm:$0xff]
        %v700 = vld [vmem:[%s2 + $0xe0] sm:$0xff]
        %v701 = vld [vmem:[%s2 + $0xe8] sm:$0xff]
        %v702 = vld [vmem:[%s2 + $0xf0] sm:$0xff]
        %v703 = vld [vmem:[%s2 + $0xf8] sm:$0xff]
        %705 = vset.pattern.permute.xlu0 0
        %706 = vperm.xlu0 %705, %v672
        %v707 = vpop.permute.xlu0 %706
        %710 = vset.pattern.permute.xlu0 0
        %711 = vperm.xlu0 %710, %v673
        %v712 = vpop.permute.xlu0 %711
        %715 = vset.pattern.permute.xlu0 0
        %716 = vperm.xlu0 %715, %v674
        %v717 = vpop.permute.xlu0 %716
        %720 = vset.pattern.permute.xlu0 0
        %721 = vperm.xlu0 %720, %v675
        %v722 = vpop.permute.xlu0 %721
        %725 = vset.pattern.permute.xlu0 0
        %726 = vperm.xlu0 %725, %v676
        %v727 = vpop.permute.xlu0 %726
        %730 = vset.pattern.permute.xlu0 0
        %731 = vperm.xlu0 %730, %v677
        %v732 = vpop.permute.xlu0 %731
        %735 = vset.pattern.permute.xlu0 0
        %736 = vperm.xlu0 %735, %v678
        %v737 = vpop.permute.xlu0 %736
        %740 = vset.pattern.permute.xlu0 0
        %741 = vperm.xlu0 %740, %v679
        %v742 = vpop.permute.xlu0 %741
        %745 = vset.pattern.permute.xlu0 0
        %746 = vperm.xlu0 %745, %v680
        %v747 = vpop.permute.xlu0 %746
        %750 = vset.pattern.permute.xlu0 0
        %751 = vperm.xlu0 %750, %v681
        %v752 = vpop.permute.xlu0 %751
        %755 = vset.pattern.permute.xlu0 0
        %756 = vperm.xlu0 %755, %v682
        %v757 = vpop.permute.xlu0 %756
        %760 = vset.pattern.permute.xlu0 0
        %761 = vperm.xlu0 %760, %v683
        %v762 = vpop.permute.xlu0 %761
        %765 = vset.pattern.permute.xlu0 0
        %766 = vperm.xlu0 %765, %v684
        %v767 = vpop.permute.xlu0 %766
        %770 = vset.pattern.permute.xlu0 0
        %771 = vperm.xlu0 %770, %v685
        %v772 = vpop.permute.xlu0 %771
        %775 = vset.pattern.permute.xlu0 0
        %776 = vperm.xlu0 %775, %v686
        %v777 = vpop.permute.xlu0 %776
        %780 = vset.pattern.permute.xlu0 0
        %781 = vperm.xlu0 %780, %v687
        %v782 = vpop.permute.xlu0 %781
        %785 = vset.pattern.permute.xlu0 0
        %786 = vperm.xlu0 %785, %v688
        %v787 = vpop.permute.xlu0 %786
        %790 = vset.pattern.permute.xlu0 0
        %791 = vperm.xlu0 %790, %v689
        %v792 = vpop.permute.xlu0 %791
        %795 = vset.pattern.permute.xlu0 0
        %796 = vperm.xlu0 %795, %v690
        %v797 = vpop.permute.xlu0 %796
        %800 = vset.pattern.permute.xlu0 0
        %801 = vperm.xlu0 %800, %v691
        %v802 = vpop.permute.xlu0 %801
        %805 = vset.pattern.permute.xlu0 0
        %806 = vperm.xlu0 %805, %v692
        %v807 = vpop.permute.xlu0 %806
        %810 = vset.pattern.permute.xlu0 0
        %811 = vperm.xlu0 %810, %v693
        %v812 = vpop.permute.xlu0 %811
        %815 = vset.pattern.permute.xlu0 0
        %816 = vperm.xlu0 %815, %v694
        %v817 = vpop.permute.xlu0 %816
        %820 = vset.pattern.permute.xlu0 0
        %821 = vperm.xlu0 %820, %v695
        %v822 = vpop.permute.xlu0 %821
        %825 = vset.pattern.permute.xlu0 0
        %826 = vperm.xlu0 %825, %v696
        %v827 = vpop.permute.xlu0 %826
        %830 = vset.pattern.permute.xlu0 0
        %831 = vperm.xlu0 %830, %v697
        %v832 = vpop.permute.xlu0 %831
        %835 = vset.pattern.permute.xlu0 0
        %836 = vperm.xlu0 %835, %v698
        %v837 = vpop.permute.xlu0 %836
        %840 = vset.pattern.permute.xlu0 0
        %841 = vperm.xlu0 %840, %v699
        %v842 = vpop.permute.xlu0 %841
        %845 = vset.pattern.permute.xlu0 0
        %846 = vperm.xlu0 %845, %v700
        %v847 = vpop.permute.xlu0 %846
        %850 = vset.pattern.permute.xlu0 0
        %851 = vperm.xlu0 %850, %v701
        %v852 = vpop.permute.xlu0 %851
        %855 = vset.pattern.permute.xlu0 0
        %856 = vperm.xlu0 %855, %v702
        %v857 = vpop.permute.xlu0 %856
        %860 = vset.pattern.permute.xlu0 0
        %861 = vperm.xlu0 %860, %v703
        %v862 = vpop.permute.xlu0 %861
        %v896 = vunpack.c.l.b16 %v640
        %v897 = vunpack.c.h.b16 %v640
        %v898 = vunpack.c.l.b16 %v641
        %v899 = vunpack.c.h.b16 %v641
        %v900 = vunpack.c.l.b16 %v642
        %v901 = vunpack.c.h.b16 %v642
        %v902 = vunpack.c.l.b16 %v643
        %v903 = vunpack.c.h.b16 %v643
        %v904 = vunpack.c.l.b16 %v644
        %v905 = vunpack.c.h.b16 %v644
        %v906 = vunpack.c.l.b16 %v645
        %v907 = vunpack.c.h.b16 %v645
        %v908 = vunpack.c.l.b16 %v646
        %v909 = vunpack.c.h.b16 %v646
        %v910 = vunpack.c.l.b16 %v647
        %v911 = vunpack.c.h.b16 %v647
        %v912 = vunpack.c.l.b16 %v648
        %v913 = vunpack.c.h.b16 %v648
        %v914 = vunpack.c.l.b16 %v649
        %v915 = vunpack.c.h.b16 %v649
        %v916 = vunpack.c.l.b16 %v650
        %v917 = vunpack.c.h.b16 %v650
        %v918 = vunpack.c.l.b16 %v651
        %v919 = vunpack.c.h.b16 %v651
        %v920 = vunpack.c.l.b16 %v652
        %v921 = vunpack.c.h.b16 %v652
        %v922 = vunpack.c.l.b16 %v653
        %v923 = vunpack.c.h.b16 %v653
        %v924 = vunpack.c.l.b16 %v654
        %v925 = vunpack.c.h.b16 %v654
        %v926 = vunpack.c.l.b16 %v655
        %v927 = vunpack.c.h.b16 %v655
        %v928 = vunpack.c.l.b16 %v656
        %v929 = vunpack.c.h.b16 %v656
        %v930 = vunpack.c.l.b16 %v657
        %v931 = vunpack.c.h.b16 %v657
        %v932 = vunpack.c.l.b16 %v658
        %v933 = vunpack.c.h.b16 %v658
        %v934 = vunpack.c.l.b16 %v659
        %v935 = vunpack.c.h.b16 %v659
        %v936 = vunpack.c.l.b16 %v660
        %v937 = vunpack.c.h.b16 %v660
        %v938 = vunpack.c.l.b16 %v661
        %v939 = vunpack.c.h.b16 %v661
        %v940 = vunpack.c.l.b16 %v662
        %v941 = vunpack.c.h.b16 %v662
        %v942 = vunpack.c.l.b16 %v663
        %v943 = vunpack.c.h.b16 %v663
        %v944 = vunpack.c.l.b16 %v664
        %v945 = vunpack.c.h.b16 %v664
        %v946 = vunpack.c.l.b16 %v665
        %v947 = vunpack.c.h.b16 %v665
        %v948 = vunpack.c.l.b16 %v666
        %v949 = vunpack.c.h.b16 %v666
        %v950 = vunpack.c.l.b16 %v667
        %v951 = vunpack.c.h.b16 %v667
        %v952 = vunpack.c.l.b16 %v668
        %v953 = vunpack.c.h.b16 %v668
        %v954 = vunpack.c.l.b16 %v669
        %v955 = vunpack.c.h.b16 %v669
        %v956 = vunpack.c.l.b16 %v670
        %v957 = vunpack.c.h.b16 %v670
        %v958 = vunpack.c.l.b16 %v671
        %v959 = vunpack.c.h.b16 %v671
        %v960 = vpack.c.b16 %v898, %v896
        %v961 = vpack.c.b16 %v899, %v897
        %v962 = vpack.c.b16 %v902, %v900
        %v963 = vpack.c.b16 %v903, %v901
        %v964 = vpack.c.b16 %v906, %v904
        %v965 = vpack.c.b16 %v907, %v905
        %v966 = vpack.c.b16 %v910, %v908
        %v967 = vpack.c.b16 %v911, %v909
        %v968 = vpack.c.b16 %v914, %v912
        %v969 = vpack.c.b16 %v915, %v913
        %v970 = vpack.c.b16 %v918, %v916
        %v971 = vpack.c.b16 %v919, %v917
        %v972 = vpack.c.b16 %v922, %v920
        %v973 = vpack.c.b16 %v923, %v921
        %v974 = vpack.c.b16 %v926, %v924
        %v975 = vpack.c.b16 %v927, %v925
        %v976 = vpack.c.b16 %v930, %v928
        %v977 = vpack.c.b16 %v931, %v929
        %v978 = vpack.c.b16 %v934, %v932
        %v979 = vpack.c.b16 %v935, %v933
        %v980 = vpack.c.b16 %v938, %v936
        %v981 = vpack.c.b16 %v939, %v937
        %v982 = vpack.c.b16 %v942, %v940
        %v983 = vpack.c.b16 %v943, %v941
        %v984 = vpack.c.b16 %v946, %v944
        %v985 = vpack.c.b16 %v947, %v945
        %v986 = vpack.c.b16 %v950, %v948
        %v987 = vpack.c.b16 %v951, %v949
        %v988 = vpack.c.b16 %v954, %v952
        %v989 = vpack.c.b16 %v955, %v953
        %v990 = vpack.c.b16 %v958, %v956
        %v991 = vpack.c.b16 %v959, %v957
        %1024 = vmatpush.bf16.msra.mxu0 %v604
        %1025 = vmatpush.bf16.msra.mxu0 %v600
        %1026 = vmatpush.bf16.msra.mxu0 %v596
        %1027 = vmatpush.bf16.msra.mxu0 %v592
        %1028 = vmatpush.bf16.msra.mxu0 %v588
        %1029 = vmatpush.bf16.msra.mxu0 %v584
        %1030 = vmatpush.bf16.msra.mxu0 %v580
        %1031 = vmatpush.bf16.msra.mxu0 %v576
        %1032 = vmatmul.bf16.gmra.mxu0 %v960
        %v1033 = vpop.f32.mrf.mxu0
        %v1034 = vadd.f32 %v707, %v1033
        %v1035 = vpop.f32.mrf.mxu0
        %v1036 = vadd.f32 %v712, %v1035
        %1037 = vmatmul.bf16.gmra.mxu0 %v962
        %v1038 = vpop.f32.mrf.mxu0
        %v1039 = vadd.f32 %v717, %v1038
        %v1040 = vpop.f32.mrf.mxu0
        %v1041 = vadd.f32 %v722, %v1040
        %1042 = vmatmul.bf16.gmra.mxu0 %v964
        %v1043 = vpop.f32.mrf.mxu0
        %v1044 = vadd.f32 %v727, %v1043
        %v1045 = vpop.f32.mrf.mxu0
        %v1046 = vadd.f32 %v732, %v1045
        %1047 = vmatmul.bf16.gmra.mxu0 %v966
        %v1048 = vpop.f32.mrf.mxu0
        %v1049 = vadd.f32 %v737, %v1048
        %v1050 = vpop.f32.mrf.mxu0
        %v1051 = vadd.f32 %v742, %v1050
        %1052 = vmatmul.bf16.gmra.mxu0 %v968
        %v1053 = vpop.f32.mrf.mxu0
        %v1054 = vadd.f32 %v747, %v1053
        %v1055 = vpop.f32.mrf.mxu0
        %v1056 = vadd.f32 %v752, %v1055
        %1057 = vmatmul.bf16.gmra.mxu0 %v970
        %v1058 = vpop.f32.mrf.mxu0
        %v1059 = vadd.f32 %v757, %v1058
        %v1060 = vpop.f32.mrf.mxu0
        %v1061 = vadd.f32 %v762, %v1060
        %1062 = vmatmul.bf16.gmra.mxu0 %v972
        %v1063 = vpop.f32.mrf.mxu0
        %v1064 = vadd.f32 %v767, %v1063
        %v1065 = vpop.f32.mrf.mxu0
        %v1066 = vadd.f32 %v772, %v1065
        %1067 = vmatmul.bf16.gmra.mxu0 %v974
        %v1068 = vpop.f32.mrf.mxu0
        %v1069 = vadd.f32 %v777, %v1068
        %v1070 = vpop.f32.mrf.mxu0
        %v1071 = vadd.f32 %v782, %v1070
        %1072 = vmatmul.bf16.gmra.mxu0 %v976
        %v1073 = vpop.f32.mrf.mxu0
        %v1074 = vadd.f32 %v787, %v1073
        %v1075 = vpop.f32.mrf.mxu0
        %v1076 = vadd.f32 %v792, %v1075
        %1077 = vmatmul.bf16.gmra.mxu0 %v978
        %v1078 = vpop.f32.mrf.mxu0
        %v1079 = vadd.f32 %v797, %v1078
        %v1080 = vpop.f32.mrf.mxu0
        %v1081 = vadd.f32 %v802, %v1080
        %1082 = vmatmul.bf16.gmra.mxu0 %v980
        %v1083 = vpop.f32.mrf.mxu0
        %v1084 = vadd.f32 %v807, %v1083
        %v1085 = vpop.f32.mrf.mxu0
        %v1086 = vadd.f32 %v812, %v1085
        %1087 = vmatmul.bf16.gmra.mxu0 %v982
        %v1088 = vpop.f32.mrf.mxu0
        %v1089 = vadd.f32 %v817, %v1088
        %v1090 = vpop.f32.mrf.mxu0
        %v1091 = vadd.f32 %v822, %v1090
        %1092 = vmatmul.bf16.gmra.mxu0 %v984
        %v1093 = vpop.f32.mrf.mxu0
        %v1094 = vadd.f32 %v827, %v1093
        %v1095 = vpop.f32.mrf.mxu0
        %v1096 = vadd.f32 %v832, %v1095
        %1097 = vmatmul.bf16.gmra.mxu0 %v986
        %v1098 = vpop.f32.mrf.mxu0
        %v1099 = vadd.f32 %v837, %v1098
        %v1100 = vpop.f32.mrf.mxu0
        %v1101 = vadd.f32 %v842, %v1100
        %1102 = vmatmul.bf16.gmra.mxu0 %v988
        %v1103 = vpop.f32.mrf.mxu0
        %v1104 = vadd.f32 %v847, %v1103
        %v1105 = vpop.f32.mrf.mxu0
        %v1106 = vadd.f32 %v852, %v1105
        %1107 = vmatmul.bf16.gmra.mxu0 %v990
        %v1108 = vpop.f32.mrf.mxu0
        %v1109 = vadd.f32 %v857, %v1108
        %v1110 = vpop.f32.mrf.mxu0
        %v1111 = vadd.f32 %v862, %v1110
        %1112 = vdwg.mxu0
        %1113 = vmatpush.bf16.msra.mxu0 %v636
        %1114 = vmatpush.bf16.msra.mxu0 %v632
        %1115 = vmatpush.bf16.msra.mxu0 %v628
        %1116 = vmatpush.bf16.msra.mxu0 %v624
        %1117 = vmatpush.bf16.msra.mxu0 %v620
        %1118 = vmatpush.bf16.msra.mxu0 %v616
        %1119 = vmatpush.bf16.msra.mxu0 %v612
        %1120 = vmatpush.bf16.msra.mxu0 %v608
        %1121 = vmatmul.bf16.gmra.mxu0 %v961
        %v1122 = vpop.f32.mrf.mxu0
        %v1123 = vadd.f32 %v1034, %v1122
        %v1124 = vpop.f32.mrf.mxu0
        %v1125 = vadd.f32 %v1036, %v1124
        %1126 = vmatmul.bf16.gmra.mxu0 %v963
        %v1127 = vpop.f32.mrf.mxu0
        %v1128 = vadd.f32 %v1039, %v1127
        %v1129 = vpop.f32.mrf.mxu0
        %v1130 = vadd.f32 %v1041, %v1129
        %1131 = vmatmul.bf16.gmra.mxu0 %v965
        %v1132 = vpop.f32.mrf.mxu0
        %v1133 = vadd.f32 %v1044, %v1132
        %v1134 = vpop.f32.mrf.mxu0
        %v1135 = vadd.f32 %v1046, %v1134
        %1136 = vmatmul.bf16.gmra.mxu0 %v967
        %v1137 = vpop.f32.mrf.mxu0
        %v1138 = vadd.f32 %v1049, %v1137
        %v1139 = vpop.f32.mrf.mxu0
        %v1140 = vadd.f32 %v1051, %v1139
        %1141 = vmatmul.bf16.gmra.mxu0 %v969
        %v1142 = vpop.f32.mrf.mxu0
        %v1143 = vadd.f32 %v1054, %v1142
        %v1144 = vpop.f32.mrf.mxu0
        %v1145 = vadd.f32 %v1056, %v1144
        %1146 = vmatmul.bf16.gmra.mxu0 %v971
        %v1147 = vpop.f32.mrf.mxu0
        %v1148 = vadd.f32 %v1059, %v1147
        %v1149 = vpop.f32.mrf.mxu0
        %v1150 = vadd.f32 %v1061, %v1149
        %1151 = vmatmul.bf16.gmra.mxu0 %v973
        %v1152 = vpop.f32.mrf.mxu0
        %v1153 = vadd.f32 %v1064, %v1152
        %v1154 = vpop.f32.mrf.mxu0
        %v1155 = vadd.f32 %v1066, %v1154
        %1156 = vmatmul.bf16.gmra.mxu0 %v975
        %v1157 = vpop.f32.mrf.mxu0
        %v1158 = vadd.f32 %v1069, %v1157
        %v1159 = vpop.f32.mrf.mxu0
        %v1160 = vadd.f32 %v1071, %v1159
        %1161 = vmatmul.bf16.gmra.mxu0 %v977
        %v1162 = vpop.f32.mrf.mxu0
        %v1163 = vadd.f32 %v1074, %v1162
        %v1164 = vpop.f32.mrf.mxu0
        %v1165 = vadd.f32 %v1076, %v1164
        %1166 = vmatmul.bf16.gmra.mxu0 %v979
        %v1167 = vpop.f32.mrf.mxu0
        %v1168 = vadd.f32 %v1079, %v1167
        %v1169 = vpop.f32.mrf.mxu0
        %v1170 = vadd.f32 %v1081, %v1169
        %1171 = vmatmul.bf16.gmra.mxu0 %v981
        %v1172 = vpop.f32.mrf.mxu0
        %v1173 = vadd.f32 %v1084, %v1172
        %v1174 = vpop.f32.mrf.mxu0
        %v1175 = vadd.f32 %v1086, %v1174
        %1176 = vmatmul.bf16.gmra.mxu0 %v983
        %v1177 = vpop.f32.mrf.mxu0
        %v1178 = vadd.f32 %v1089, %v1177
        %v1179 = vpop.f32.mrf.mxu0
        %v1180 = vadd.f32 %v1091, %v1179
        %1181 = vmatmul.bf16.gmra.mxu0 %v985
        %v1182 = vpop.f32.mrf.mxu0
        %v1183 = vadd.f32 %v1094, %v1182
        %v1184 = vpop.f32.mrf.mxu0
        %v1185 = vadd.f32 %v1096, %v1184
        %1186 = vmatmul.bf16.gmra.mxu0 %v987
        %v1187 = vpop.f32.mrf.mxu0
        %v1188 = vadd.f32 %v1099, %v1187
        %v1189 = vpop.f32.mrf.mxu0
        %v1190 = vadd.f32 %v1101, %v1189
        %1191 = vmatmul.bf16.gmra.mxu0 %v989
        %v1192 = vpop.f32.mrf.mxu0
        %v1193 = vadd.f32 %v1104, %v1192
        %v1194 = vpop.f32.mrf.mxu0
        %v1195 = vadd.f32 %v1106, %v1194
        %1196 = vmatmul.bf16.gmra.mxu0 %v991
        %v1197 = vpop.f32.mrf.mxu0
        %v1198 = vadd.f32 %v1109, %v1197
        %v1199 = vpop.f32.mrf.mxu0
        %v1200 = vadd.f32 %v1111, %v1199
        %1201 = vdwg.mxu0
        %1202 = vmatpush.bf16.msra.mxu0 %v605
        %1203 = vmatpush.bf16.msra.mxu0 %v601
        %1204 = vmatpush.bf16.msra.mxu0 %v597
        %1205 = vmatpush.bf16.msra.mxu0 %v593
        %1206 = vmatpush.bf16.msra.mxu0 %v589
        %1207 = vmatpush.bf16.msra.mxu0 %v585
        %1208 = vmatpush.bf16.msra.mxu0 %v581
        %1209 = vmatpush.bf16.msra.mxu0 %v577
        %1210 = vmatmul.bf16.gmra.mxu0 %v960
        %v1211 = vpop.f32.mrf.mxu0
        %v1212 = vadd.f32 %v707, %v1211
        %v1213 = vpop.f32.mrf.mxu0
        %v1214 = vadd.f32 %v712, %v1213
        %1215 = vmatmul.bf16.gmra.mxu0 %v962
        %v1216 = vpop.f32.mrf.mxu0
        %v1217 = vadd.f32 %v717, %v1216
        %v1218 = vpop.f32.mrf.mxu0
        %v1219 = vadd.f32 %v722, %v1218
        %1220 = vmatmul.bf16.gmra.mxu0 %v964
        %v1221 = vpop.f32.mrf.mxu0
        %v1222 = vadd.f32 %v727, %v1221
        %v1223 = vpop.f32.mrf.mxu0
        %v1224 = vadd.f32 %v732, %v1223
        %1225 = vmatmul.bf16.gmra.mxu0 %v966
        %v1226 = vpop.f32.mrf.mxu0
        %v1227 = vadd.f32 %v737, %v1226
        %v1228 = vpop.f32.mrf.mxu0
        %v1229 = vadd.f32 %v742, %v1228
        %1230 = vmatmul.bf16.gmra.mxu0 %v968
        %v1231 = vpop.f32.mrf.mxu0
        %v1232 = vadd.f32 %v747, %v1231
        %v1233 = vpop.f32.mrf.mxu0
        %v1234 = vadd.f32 %v752, %v1233
        %1235 = vmatmul.bf16.gmra.mxu0 %v970
        %v1236 = vpop.f32.mrf.mxu0
        %v1237 = vadd.f32 %v757, %v1236
        %v1238 = vpop.f32.mrf.mxu0
        %v1239 = vadd.f32 %v762, %v1238
        %1240 = vmatmul.bf16.gmra.mxu0 %v972
        %v1241 = vpop.f32.mrf.mxu0
        %v1242 = vadd.f32 %v767, %v1241
        %v1243 = vpop.f32.mrf.mxu0
        %v1244 = vadd.f32 %v772, %v1243
        %1245 = vmatmul.bf16.gmra.mxu0 %v974
        %v1246 = vpop.f32.mrf.mxu0
        %v1247 = vadd.f32 %v777, %v1246
        %v1248 = vpop.f32.mrf.mxu0
        %v1249 = vadd.f32 %v782, %v1248
        %1250 = vmatmul.bf16.gmra.mxu0 %v976
        %v1251 = vpop.f32.mrf.mxu0
        %v1252 = vadd.f32 %v787, %v1251
        %v1253 = vpop.f32.mrf.mxu0
        %v1254 = vadd.f32 %v792, %v1253
        %1255 = vmatmul.bf16.gmra.mxu0 %v978
        %v1256 = vpop.f32.mrf.mxu0
        %v1257 = vadd.f32 %v797, %v1256
        %v1258 = vpop.f32.mrf.mxu0
        %v1259 = vadd.f32 %v802, %v1258
        %1260 = vmatmul.bf16.gmra.mxu0 %v980
        %v1261 = vpop.f32.mrf.mxu0
        %v1262 = vadd.f32 %v807, %v1261
        %v1263 = vpop.f32.mrf.mxu0
        %v1264 = vadd.f32 %v812, %v1263
        %1265 = vmatmul.bf16.gmra.mxu0 %v982
        %v1266 = vpop.f32.mrf.mxu0
        %v1267 = vadd.f32 %v817, %v1266
        %v1268 = vpop.f32.mrf.mxu0
        %v1269 = vadd.f32 %v822, %v1268
        %1270 = vmatmul.bf16.gmra.mxu0 %v984
        %v1271 = vpop.f32.mrf.mxu0
        %v1272 = vadd.f32 %v827, %v1271
        %v1273 = vpop.f32.mrf.mxu0
        %v1274 = vadd.f32 %v832, %v1273
        %1275 = vmatmul.bf16.gmra.mxu0 %v986
        %v1276 = vpop.f32.mrf.mxu0
        %v1277 = vadd.f32 %v837, %v1276
        %v1278 = vpop.f32.mrf.mxu0
        %v1279 = vadd.f32 %v842, %v1278
        %1280 = vmatmul.bf16.gmra.mxu0 %v988
        %v1281 = vpop.f32.mrf.mxu0
        %v1282 = vadd.f32 %v847, %v1281
        %v1283 = vpop.f32.mrf.mxu0
        %v1284 = vadd.f32 %v852, %v1283
        %1285 = vmatmul.bf16.gmra.mxu0 %v990
        %v1286 = vpop.f32.mrf.mxu0
        %v1287 = vadd.f32 %v857, %v1286
        %v1288 = vpop.f32.mrf.mxu0
        %v1289 = vadd.f32 %v862, %v1288
        %1290 = vdwg.mxu0
        %1291 = vmatpush.bf16.msra.mxu0 %v637
        %1292 = vmatpush.bf16.msra.mxu0 %v633
        %1293 = vmatpush.bf16.msra.mxu0 %v629
        %1294 = vmatpush.bf16.msra.mxu0 %v625
        %1295 = vmatpush.bf16.msra.mxu0 %v621
        %1296 = vmatpush.bf16.msra.mxu0 %v617
        %1297 = vmatpush.bf16.msra.mxu0 %v613
        %1298 = vmatpush.bf16.msra.mxu0 %v609
        %1299 = vmatmul.bf16.gmra.mxu0 %v961
        %v1300 = vpop.f32.mrf.mxu0
        %v1301 = vadd.f32 %v1212, %v1300
        %v1302 = vpop.f32.mrf.mxu0
        %v1303 = vadd.f32 %v1214, %v1302
        %1304 = vmatmul.bf16.gmra.mxu0 %v963
        %v1305 = vpop.f32.mrf.mxu0
        %v1306 = vadd.f32 %v1217, %v1305
        %v1307 = vpop.f32.mrf.mxu0
        %v1308 = vadd.f32 %v1219, %v1307
        %1309 = vmatmul.bf16.gmra.mxu0 %v965
        %v1310 = vpop.f32.mrf.mxu0
        %v1311 = vadd.f32 %v1222, %v1310
        %v1312 = vpop.f32.mrf.mxu0
        %v1313 = vadd.f32 %v1224, %v1312
        %1314 = vmatmul.bf16.gmra.mxu0 %v967
        %v1315 = vpop.f32.mrf.mxu0
        %v1316 = vadd.f32 %v1227, %v1315
        %v1317 = vpop.f32.mrf.mxu0
        %v1318 = vadd.f32 %v1229, %v1317
        %1319 = vmatmul.bf16.gmra.mxu0 %v969
        %v1320 = vpop.f32.mrf.mxu0
        %v1321 = vadd.f32 %v1232, %v1320
        %v1322 = vpop.f32.mrf.mxu0
        %v1323 = vadd.f32 %v1234, %v1322
        %1324 = vmatmul.bf16.gmra.mxu0 %v971
        %v1325 = vpop.f32.mrf.mxu0
        %v1326 = vadd.f32 %v1237, %v1325
        %v1327 = vpop.f32.mrf.mxu0
        %v1328 = vadd.f32 %v1239, %v1327
        %1329 = vmatmul.bf16.gmra.mxu0 %v973
        %v1330 = vpop.f32.mrf.mxu0
        %v1331 = vadd.f32 %v1242, %v1330
        %v1332 = vpop.f32.mrf.mxu0
        %v1333 = vadd.f32 %v1244, %v1332
        %1334 = vmatmul.bf16.gmra.mxu0 %v975
        %v1335 = vpop.f32.mrf.mxu0
        %v1336 = vadd.f32 %v1247, %v1335
        %v1337 = vpop.f32.mrf.mxu0
        %v1338 = vadd.f32 %v1249, %v1337
        %1339 = vmatmul.bf16.gmra.mxu0 %v977
        %v1340 = vpop.f32.mrf.mxu0
        %v1341 = vadd.f32 %v1252, %v1340
        %v1342 = vpop.f32.mrf.mxu0
        %v1343 = vadd.f32 %v1254, %v1342
        %1344 = vmatmul.bf16.gmra.mxu0 %v979
        %v1345 = vpop.f32.mrf.mxu0
        %v1346 = vadd.f32 %v1257, %v1345
        %v1347 = vpop.f32.mrf.mxu0
        %v1348 = vadd.f32 %v1259, %v1347
        %1349 = vmatmul.bf16.gmra.mxu0 %v981
        %v1350 = vpop.f32.mrf.mxu0
        %v1351 = vadd.f32 %v1262, %v1350
        %v1352 = vpop.f32.mrf.mxu0
        %v1353 = vadd.f32 %v1264, %v1352
        %1354 = vmatmul.bf16.gmra.mxu0 %v983
        %v1355 = vpop.f32.mrf.mxu0
        %v1356 = vadd.f32 %v1267, %v1355
        %v1357 = vpop.f32.mrf.mxu0
        %v1358 = vadd.f32 %v1269, %v1357
        %1359 = vmatmul.bf16.gmra.mxu0 %v985
        %v1360 = vpop.f32.mrf.mxu0
        %v1361 = vadd.f32 %v1272, %v1360
        %v1362 = vpop.f32.mrf.mxu0
        %v1363 = vadd.f32 %v1274, %v1362
        %1364 = vmatmul.bf16.gmra.mxu0 %v987
        %v1365 = vpop.f32.mrf.mxu0
        %v1366 = vadd.f32 %v1277, %v1365
        %v1367 = vpop.f32.mrf.mxu0
        %v1368 = vadd.f32 %v1279, %v1367
        %1369 = vmatmul.bf16.gmra.mxu0 %v989
        %v1370 = vpop.f32.mrf.mxu0
        %v1371 = vadd.f32 %v1282, %v1370
        %v1372 = vpop.f32.mrf.mxu0
        %v1373 = vadd.f32 %v1284, %v1372
        %1374 = vmatmul.bf16.gmra.mxu0 %v991
        %v1375 = vpop.f32.mrf.mxu0
        %v1376 = vadd.f32 %v1287, %v1375
        %v1377 = vpop.f32.mrf.mxu0
        %v1378 = vadd.f32 %v1289, %v1377
        %1379 = vdwg.mxu0
        %1380 = vmatpush.bf16.msra.mxu0 %v606
        %1381 = vmatpush.bf16.msra.mxu0 %v602
        %1382 = vmatpush.bf16.msra.mxu0 %v598
        %1383 = vmatpush.bf16.msra.mxu0 %v594
        %1384 = vmatpush.bf16.msra.mxu0 %v590
        %1385 = vmatpush.bf16.msra.mxu0 %v586
        %1386 = vmatpush.bf16.msra.mxu0 %v582
        %1387 = vmatpush.bf16.msra.mxu0 %v578
        %1388 = vmatmul.bf16.gmra.mxu0 %v960
        %v1389 = vpop.f32.mrf.mxu0
        %v1390 = vadd.f32 %v707, %v1389
        %v1391 = vpop.f32.mrf.mxu0
        %v1392 = vadd.f32 %v712, %v1391
        %1393 = vmatmul.bf16.gmra.mxu0 %v962
        %v1394 = vpop.f32.mrf.mxu0
        %v1395 = vadd.f32 %v717, %v1394
        %v1396 = vpop.f32.mrf.mxu0
        %v1397 = vadd.f32 %v722, %v1396
        %1398 = vmatmul.bf16.gmra.mxu0 %v964
        %v1399 = vpop.f32.mrf.mxu0
        %v1400 = vadd.f32 %v727, %v1399
        %v1401 = vpop.f32.mrf.mxu0
        %v1402 = vadd.f32 %v732, %v1401
        %1403 = vmatmul.bf16.gmra.mxu0 %v966
        %v1404 = vpop.f32.mrf.mxu0
        %v1405 = vadd.f32 %v737, %v1404
        %v1406 = vpop.f32.mrf.mxu0
        %v1407 = vadd.f32 %v742, %v1406
        %1408 = vmatmul.bf16.gmra.mxu0 %v968
        %v1409 = vpop.f32.mrf.mxu0
        %v1410 = vadd.f32 %v747, %v1409
        %v1411 = vpop.f32.mrf.mxu0
        %v1412 = vadd.f32 %v752, %v1411
        %1413 = vmatmul.bf16.gmra.mxu0 %v970
        %v1414 = vpop.f32.mrf.mxu0
        %v1415 = vadd.f32 %v757, %v1414
        %v1416 = vpop.f32.mrf.mxu0
        %v1417 = vadd.f32 %v762, %v1416
        %1418 = vmatmul.bf16.gmra.mxu0 %v972
        %v1419 = vpop.f32.mrf.mxu0
        %v1420 = vadd.f32 %v767, %v1419
        %v1421 = vpop.f32.mrf.mxu0
        %v1422 = vadd.f32 %v772, %v1421
        %1423 = vmatmul.bf16.gmra.mxu0 %v974
        %v1424 = vpop.f32.mrf.mxu0
        %v1425 = vadd.f32 %v777, %v1424
        %v1426 = vpop.f32.mrf.mxu0
        %v1427 = vadd.f32 %v782, %v1426
        %1428 = vmatmul.bf16.gmra.mxu0 %v976
        %v1429 = vpop.f32.mrf.mxu0
        %v1430 = vadd.f32 %v787, %v1429
        %v1431 = vpop.f32.mrf.mxu0
        %v1432 = vadd.f32 %v792, %v1431
        %1433 = vmatmul.bf16.gmra.mxu0 %v978
        %v1434 = vpop.f32.mrf.mxu0
        %v1435 = vadd.f32 %v797, %v1434
        %v1436 = vpop.f32.mrf.mxu0
        %v1437 = vadd.f32 %v802, %v1436
        %1438 = vmatmul.bf16.gmra.mxu0 %v980
        %v1439 = vpop.f32.mrf.mxu0
        %v1440 = vadd.f32 %v807, %v1439
        %v1441 = vpop.f32.mrf.mxu0
        %v1442 = vadd.f32 %v812, %v1441
        %1443 = vmatmul.bf16.gmra.mxu0 %v982
        %v1444 = vpop.f32.mrf.mxu0
        %v1445 = vadd.f32 %v817, %v1444
        %v1446 = vpop.f32.mrf.mxu0
        %v1447 = vadd.f32 %v822, %v1446
        %1448 = vmatmul.bf16.gmra.mxu0 %v984
        %v1449 = vpop.f32.mrf.mxu0
        %v1450 = vadd.f32 %v827, %v1449
        %v1451 = vpop.f32.mrf.mxu0
        %v1452 = vadd.f32 %v832, %v1451
        %1453 = vmatmul.bf16.gmra.mxu0 %v986
        %v1454 = vpop.f32.mrf.mxu0
        %v1455 = vadd.f32 %v837, %v1454
        %v1456 = vpop.f32.mrf.mxu0
        %v1457 = vadd.f32 %v842, %v1456
        %1458 = vmatmul.bf16.gmra.mxu0 %v988
        %v1459 = vpop.f32.mrf.mxu0
        %v1460 = vadd.f32 %v847, %v1459
        %v1461 = vpop.f32.mrf.mxu0
        %v1462 = vadd.f32 %v852, %v1461
        %1463 = vmatmul.bf16.gmra.mxu0 %v990
        %v1464 = vpop.f32.mrf.mxu0
        %v1465 = vadd.f32 %v857, %v1464
        %v1466 = vpop.f32.mrf.mxu0
        %v1467 = vadd.f32 %v862, %v1466
        %1468 = vdwg.mxu0
        %1469 = vmatpush.bf16.msra.mxu0 %v638
        %1470 = vmatpush.bf16.msra.mxu0 %v634
        %1471 = vmatpush.bf16.msra.mxu0 %v630
        %1472 = vmatpush.bf16.msra.mxu0 %v626
        %1473 = vmatpush.bf16.msra.mxu0 %v622
        %1474 = vmatpush.bf16.msra.mxu0 %v618
        %1475 = vmatpush.bf16.msra.mxu0 %v614
        %1476 = vmatpush.bf16.msra.mxu0 %v610
        %1477 = vmatmul.bf16.gmra.mxu0 %v961
        %v1478 = vpop.f32.mrf.mxu0
        %v1479 = vadd.f32 %v1390, %v1478
        %v1480 = vpop.f32.mrf.mxu0
        %v1481 = vadd.f32 %v1392, %v1480
        %1482 = vmatmul.bf16.gmra.mxu0 %v963
        %v1483 = vpop.f32.mrf.mxu0
        %v1484 = vadd.f32 %v1395, %v1483
        %v1485 = vpop.f32.mrf.mxu0
        %v1486 = vadd.f32 %v1397, %v1485
        %1487 = vmatmul.bf16.gmra.mxu0 %v965
        %v1488 = vpop.f32.mrf.mxu0
        %v1489 = vadd.f32 %v1400, %v1488
        %v1490 = vpop.f32.mrf.mxu0
        %v1491 = vadd.f32 %v1402, %v1490
        %1492 = vmatmul.bf16.gmra.mxu0 %v967
        %v1493 = vpop.f32.mrf.mxu0
        %v1494 = vadd.f32 %v1405, %v1493
        %v1495 = vpop.f32.mrf.mxu0
        %v1496 = vadd.f32 %v1407, %v1495
        %1497 = vmatmul.bf16.gmra.mxu0 %v969
        %v1498 = vpop.f32.mrf.mxu0
        %v1499 = vadd.f32 %v1410, %v1498
        %v1500 = vpop.f32.mrf.mxu0
        %v1501 = vadd.f32 %v1412, %v1500
        %1502 = vmatmul.bf16.gmra.mxu0 %v971
        %v1503 = vpop.f32.mrf.mxu0
        %v1504 = vadd.f32 %v1415, %v1503
        %v1505 = vpop.f32.mrf.mxu0
        %v1506 = vadd.f32 %v1417, %v1505
        %1507 = vmatmul.bf16.gmra.mxu0 %v973
        %v1508 = vpop.f32.mrf.mxu0
        %v1509 = vadd.f32 %v1420, %v1508
        %v1510 = vpop.f32.mrf.mxu0
        %v1511 = vadd.f32 %v1422, %v1510
        %1512 = vmatmul.bf16.gmra.mxu0 %v975
        %v1513 = vpop.f32.mrf.mxu0
        %v1514 = vadd.f32 %v1425, %v1513
        %v1515 = vpop.f32.mrf.mxu0
        %v1516 = vadd.f32 %v1427, %v1515
        %1517 = vmatmul.bf16.gmra.mxu0 %v977
        %v1518 = vpop.f32.mrf.mxu0
        %v1519 = vadd.f32 %v1430, %v1518
        %v1520 = vpop.f32.mrf.mxu0
        %v1521 = vadd.f32 %v1432, %v1520
        %1522 = vmatmul.bf16.gmra.mxu0 %v979
        %v1523 = vpop.f32.mrf.mxu0
        %v1524 = vadd.f32 %v1435, %v1523
        %v1525 = vpop.f32.mrf.mxu0
        %v1526 = vadd.f32 %v1437, %v1525
        %1527 = vmatmul.bf16.gmra.mxu0 %v981
        %v1528 = vpop.f32.mrf.mxu0
        %v1529 = vadd.f32 %v1440, %v1528
        %v1530 = vpop.f32.mrf.mxu0
        %v1531 = vadd.f32 %v1442, %v1530
        %1532 = vmatmul.bf16.gmra.mxu0 %v983
        %v1533 = vpop.f32.mrf.mxu0
        %v1534 = vadd.f32 %v1445, %v1533
        %v1535 = vpop.f32.mrf.mxu0
        %v1536 = vadd.f32 %v1447, %v1535
        %1537 = vmatmul.bf16.gmra.mxu0 %v985
        %v1538 = vpop.f32.mrf.mxu0
        %v1539 = vadd.f32 %v1450, %v1538
        %v1540 = vpop.f32.mrf.mxu0
        %v1541 = vadd.f32 %v1452, %v1540
        %1542 = vmatmul.bf16.gmra.mxu0 %v987
        %v1543 = vpop.f32.mrf.mxu0
        %v1544 = vadd.f32 %v1455, %v1543
        %v1545 = vpop.f32.mrf.mxu0
        %v1546 = vadd.f32 %v1457, %v1545
        %1547 = vmatmul.bf16.gmra.mxu0 %v989
        %v1548 = vpop.f32.mrf.mxu0
        %v1549 = vadd.f32 %v1460, %v1548
        %v1550 = vpop.f32.mrf.mxu0
        %v1551 = vadd.f32 %v1462, %v1550
        %1552 = vmatmul.bf16.gmra.mxu0 %v991
        %v1553 = vpop.f32.mrf.mxu0
        %v1554 = vadd.f32 %v1465, %v1553
        %v1555 = vpop.f32.mrf.mxu0
        %v1556 = vadd.f32 %v1467, %v1555
        %1557 = vdwg.mxu0
        %1558 = vmatpush.bf16.msra.mxu0 %v607
        %1559 = vmatpush.bf16.msra.mxu0 %v603
        %1560 = vmatpush.bf16.msra.mxu0 %v599
        %1561 = vmatpush.bf16.msra.mxu0 %v595
        %1562 = vmatpush.bf16.msra.mxu0 %v591
        %1563 = vmatpush.bf16.msra.mxu0 %v587
        %1564 = vmatpush.bf16.msra.mxu0 %v583
        %1565 = vmatpush.bf16.msra.mxu0 %v579
        %1566 = vmatmul.bf16.gmra.mxu0 %v960
        %v1567 = vpop.f32.mrf.mxu0
        %v1568 = vadd.f32 %v707, %v1567
        %v1569 = vpop.f32.mrf.mxu0
        %v1570 = vadd.f32 %v712, %v1569
        %1571 = vmatmul.bf16.gmra.mxu0 %v962
        %v1572 = vpop.f32.mrf.mxu0
        %v1573 = vadd.f32 %v717, %v1572
        %v1574 = vpop.f32.mrf.mxu0
        %v1575 = vadd.f32 %v722, %v1574
        %1576 = vmatmul.bf16.gmra.mxu0 %v964
        %v1577 = vpop.f32.mrf.mxu0
        %v1578 = vadd.f32 %v727, %v1577
        %v1579 = vpop.f32.mrf.mxu0
        %v1580 = vadd.f32 %v732, %v1579
        %1581 = vmatmul.bf16.gmra.mxu0 %v966
        %v1582 = vpop.f32.mrf.mxu0
        %v1583 = vadd.f32 %v737, %v1582
        %v1584 = vpop.f32.mrf.mxu0
        %v1585 = vadd.f32 %v742, %v1584
        %1586 = vmatmul.bf16.gmra.mxu0 %v968
        %v1587 = vpop.f32.mrf.mxu0
        %v1588 = vadd.f32 %v747, %v1587
        %v1589 = vpop.f32.mrf.mxu0
        %v1590 = vadd.f32 %v752, %v1589
        %1591 = vmatmul.bf16.gmra.mxu0 %v970
        %v1592 = vpop.f32.mrf.mxu0
        %v1593 = vadd.f32 %v757, %v1592
        %v1594 = vpop.f32.mrf.mxu0
        %v1595 = vadd.f32 %v762, %v1594
        %1596 = vmatmul.bf16.gmra.mxu0 %v972
        %v1597 = vpop.f32.mrf.mxu0
        %v1598 = vadd.f32 %v767, %v1597
        %v1599 = vpop.f32.mrf.mxu0
        %v1600 = vadd.f32 %v772, %v1599
        %1601 = vmatmul.bf16.gmra.mxu0 %v974
        %v1602 = vpop.f32.mrf.mxu0
        %v1603 = vadd.f32 %v777, %v1602
        %v1604 = vpop.f32.mrf.mxu0
        %v1605 = vadd.f32 %v782, %v1604
        %1606 = vmatmul.bf16.gmra.mxu0 %v976
        %v1607 = vpop.f32.mrf.mxu0
        %v1608 = vadd.f32 %v787, %v1607
        %v1609 = vpop.f32.mrf.mxu0
        %v1610 = vadd.f32 %v792, %v1609
        %1611 = vmatmul.bf16.gmra.mxu0 %v978
        %v1612 = vpop.f32.mrf.mxu0
        %v1613 = vadd.f32 %v797, %v1612
        %v1614 = vpop.f32.mrf.mxu0
        %v1615 = vadd.f32 %v802, %v1614
        %1616 = vmatmul.bf16.gmra.mxu0 %v980
        %v1617 = vpop.f32.mrf.mxu0
        %v1618 = vadd.f32 %v807, %v1617
        %v1619 = vpop.f32.mrf.mxu0
        %v1620 = vadd.f32 %v812, %v1619
        %1621 = vmatmul.bf16.gmra.mxu0 %v982
        %v1622 = vpop.f32.mrf.mxu0
        %v1623 = vadd.f32 %v817, %v1622
        %v1624 = vpop.f32.mrf.mxu0
        %v1625 = vadd.f32 %v822, %v1624
        %1626 = vmatmul.bf16.gmra.mxu0 %v984
        %v1627 = vpop.f32.mrf.mxu0
        %v1628 = vadd.f32 %v827, %v1627
        %v1629 = vpop.f32.mrf.mxu0
        %v1630 = vadd.f32 %v832, %v1629
        %1631 = vmatmul.bf16.gmra.mxu0 %v986
        %v1632 = vpop.f32.mrf.mxu0
        %v1633 = vadd.f32 %v837, %v1632
        %v1634 = vpop.f32.mrf.mxu0
        %v1635 = vadd.f32 %v842, %v1634
        %1636 = vmatmul.bf16.gmra.mxu0 %v988
        %v1637 = vpop.f32.mrf.mxu0
        %v1638 = vadd.f32 %v847, %v1637
        %v1639 = vpop.f32.mrf.mxu0
        %v1640 = vadd.f32 %v852, %v1639
        %1641 = vmatmul.bf16.gmra.mxu0 %v990
        %v1642 = vpop.f32.mrf.mxu0
        %v1643 = vadd.f32 %v857, %v1642
        %v1644 = vpop.f32.mrf.mxu0
        %v1645 = vadd.f32 %v862, %v1644
        %1646 = vdwg.mxu0
        %1647 = vmatpush.bf16.msra.mxu0 %v639
        %1648 = vmatpush.bf16.msra.mxu0 %v635
        %1649 = vmatpush.bf16.msra.mxu0 %v631
        %1650 = vmatpush.bf16.msra.mxu0 %v627
        %1651 = vmatpush.bf16.msra.mxu0 %v623
        %1652 = vmatpush.bf16.msra.mxu0 %v619
        %1653 = vmatpush.bf16.msra.mxu0 %v615
        %1654 = vmatpush.bf16.msra.mxu0 %v611
        %1655 = vmatmul.bf16.gmra.mxu0 %v961
        %v1656 = vpop.f32.mrf.mxu0
        %v1657 = vadd.f32 %v1568, %v1656
        %v1658 = vpop.f32.mrf.mxu0
        %v1659 = vadd.f32 %v1570, %v1658
        %1660 = vmatmul.bf16.gmra.mxu0 %v963
        %v1661 = vpop.f32.mrf.mxu0
        %v1662 = vadd.f32 %v1573, %v1661
        %v1663 = vpop.f32.mrf.mxu0
        %v1664 = vadd.f32 %v1575, %v1663
        %1665 = vmatmul.bf16.gmra.mxu0 %v965
        %v1666 = vpop.f32.mrf.mxu0
        %v1667 = vadd.f32 %v1578, %v1666
        %v1668 = vpop.f32.mrf.mxu0
        %v1669 = vadd.f32 %v1580, %v1668
        %1670 = vmatmul.bf16.gmra.mxu0 %v967
        %v1671 = vpop.f32.mrf.mxu0
        %v1672 = vadd.f32 %v1583, %v1671
        %v1673 = vpop.f32.mrf.mxu0
        %v1674 = vadd.f32 %v1585, %v1673
        %1675 = vmatmul.bf16.gmra.mxu0 %v969
        %v1676 = vpop.f32.mrf.mxu0
        %v1677 = vadd.f32 %v1588, %v1676
        %v1678 = vpop.f32.mrf.mxu0
        %v1679 = vadd.f32 %v1590, %v1678
        %1680 = vmatmul.bf16.gmra.mxu0 %v971
        %v1681 = vpop.f32.mrf.mxu0
        %v1682 = vadd.f32 %v1593, %v1681
        %v1683 = vpop.f32.mrf.mxu0
        %v1684 = vadd.f32 %v1595, %v1683
        %1685 = vmatmul.bf16.gmra.mxu0 %v973
        %v1686 = vpop.f32.mrf.mxu0
        %v1687 = vadd.f32 %v1598, %v1686
        %v1688 = vpop.f32.mrf.mxu0
        %v1689 = vadd.f32 %v1600, %v1688
        %1690 = vmatmul.bf16.gmra.mxu0 %v975
        %v1691 = vpop.f32.mrf.mxu0
        %v1692 = vadd.f32 %v1603, %v1691
        %v1693 = vpop.f32.mrf.mxu0
        %v1694 = vadd.f32 %v1605, %v1693
        %1695 = vmatmul.bf16.gmra.mxu0 %v977
        %v1696 = vpop.f32.mrf.mxu0
        %v1697 = vadd.f32 %v1608, %v1696
        %v1698 = vpop.f32.mrf.mxu0
        %v1699 = vadd.f32 %v1610, %v1698
        %1700 = vmatmul.bf16.gmra.mxu0 %v979
        %v1701 = vpop.f32.mrf.mxu0
        %v1702 = vadd.f32 %v1613, %v1701
        %v1703 = vpop.f32.mrf.mxu0
        %v1704 = vadd.f32 %v1615, %v1703
        %1705 = vmatmul.bf16.gmra.mxu0 %v981
        %v1706 = vpop.f32.mrf.mxu0
        %v1707 = vadd.f32 %v1618, %v1706
        %v1708 = vpop.f32.mrf.mxu0
        %v1709 = vadd.f32 %v1620, %v1708
        %1710 = vmatmul.bf16.gmra.mxu0 %v983
        %v1711 = vpop.f32.mrf.mxu0
        %v1712 = vadd.f32 %v1623, %v1711
        %v1713 = vpop.f32.mrf.mxu0
        %v1714 = vadd.f32 %v1625, %v1713
        %1715 = vmatmul.bf16.gmra.mxu0 %v985
        %v1716 = vpop.f32.mrf.mxu0
        %v1717 = vadd.f32 %v1628, %v1716
        %v1718 = vpop.f32.mrf.mxu0
        %v1719 = vadd.f32 %v1630, %v1718
        %1720 = vmatmul.bf16.gmra.mxu0 %v987
        %v1721 = vpop.f32.mrf.mxu0
        %v1722 = vadd.f32 %v1633, %v1721
        %v1723 = vpop.f32.mrf.mxu0
        %v1724 = vadd.f32 %v1635, %v1723
        %1725 = vmatmul.bf16.gmra.mxu0 %v989
        %v1726 = vpop.f32.mrf.mxu0
        %v1727 = vadd.f32 %v1638, %v1726
        %v1728 = vpop.f32.mrf.mxu0
        %v1729 = vadd.f32 %v1640, %v1728
        %1730 = vmatmul.bf16.gmra.mxu0 %v991
        %v1731 = vpop.f32.mrf.mxu0
        %v1732 = vadd.f32 %v1643, %v1731
        %v1733 = vpop.f32.mrf.mxu0
        %v1734 = vadd.f32 %v1645, %v1733
        %1735 = vdwg.mxu0
        %v1736 = vmax.f32 %v1123, 0.0
        %v1737 = vmax.f32 %v1301, 0.0
        %v1738 = vmax.f32 %v1479, 0.0
        %v1739 = vmax.f32 %v1657, 0.0
        %v1740 = vmax.f32 %v1125, 0.0
        %v1741 = vmax.f32 %v1303, 0.0
        %v1742 = vmax.f32 %v1481, 0.0
        %v1743 = vmax.f32 %v1659, 0.0
        %v1744 = vmax.f32 %v1128, 0.0
        %v1745 = vmax.f32 %v1306, 0.0
        %v1746 = vmax.f32 %v1484, 0.0
        %v1747 = vmax.f32 %v1662, 0.0
        %v1748 = vmax.f32 %v1130, 0.0
        %v1749 = vmax.f32 %v1308, 0.0
        %v1750 = vmax.f32 %v1486, 0.0
        %v1751 = vmax.f32 %v1664, 0.0
        %v1752 = vmax.f32 %v1133, 0.0
        %v1753 = vmax.f32 %v1311, 0.0
        %v1754 = vmax.f32 %v1489, 0.0
        %v1755 = vmax.f32 %v1667, 0.0
        %v1756 = vmax.f32 %v1135, 0.0
        %v1757 = vmax.f32 %v1313, 0.0
        %v1758 = vmax.f32 %v1491, 0.0
        %v1759 = vmax.f32 %v1669, 0.0
        %v1760 = vmax.f32 %v1138, 0.0
        %v1761 = vmax.f32 %v1316, 0.0
        %v1762 = vmax.f32 %v1494, 0.0
        %v1763 = vmax.f32 %v1672, 0.0
        %v1764 = vmax.f32 %v1140, 0.0
        %v1765 = vmax.f32 %v1318, 0.0
        %v1766 = vmax.f32 %v1496, 0.0
        %v1767 = vmax.f32 %v1674, 0.0
        %v1768 = vmax.f32 %v1143, 0.0
        %v1769 = vmax.f32 %v1321, 0.0
        %v1770 = vmax.f32 %v1499, 0.0
        %v1771 = vmax.f32 %v1677, 0.0
        %v1772 = vmax.f32 %v1145, 0.0
        %v1773 = vmax.f32 %v1323, 0.0
        %v1774 = vmax.f32 %v1501, 0.0
        %v1775 = vmax.f32 %v1679, 0.0
        %v1776 = vmax.f32 %v1148, 0.0
        %v1777 = vmax.f32 %v1326, 0.0
        %v1778 = vmax.f32 %v1504, 0.0
        %v1779 = vmax.f32 %v1682, 0.0
        %v1780 = vmax.f32 %v1150, 0.0
        %v1781 = vmax.f32 %v1328, 0.0
        %v1782 = vmax.f32 %v1506, 0.0
        %v1783 = vmax.f32 %v1684, 0.0
        %v1784 = vmax.f32 %v1153, 0.0
        %v1785 = vmax.f32 %v1331, 0.0
        %v1786 = vmax.f32 %v1509, 0.0
        %v1787 = vmax.f32 %v1687, 0.0
        %v1788 = vmax.f32 %v1155, 0.0
        %v1789 = vmax.f32 %v1333, 0.0
        %v1790 = vmax.f32 %v1511, 0.0
        %v1791 = vmax.f32 %v1689, 0.0
        %v1792 = vmax.f32 %v1158, 0.0
        %v1793 = vmax.f32 %v1336, 0.0
        %v1794 = vmax.f32 %v1514, 0.0
        %v1795 = vmax.f32 %v1692, 0.0
        %v1796 = vmax.f32 %v1160, 0.0
        %v1797 = vmax.f32 %v1338, 0.0
        %v1798 = vmax.f32 %v1516, 0.0
        %v1799 = vmax.f32 %v1694, 0.0
        %v1800 = vmax.f32 %v1163, 0.0
        %v1801 = vmax.f32 %v1341, 0.0
        %v1802 = vmax.f32 %v1519, 0.0
        %v1803 = vmax.f32 %v1697, 0.0
        %v1804 = vmax.f32 %v1165, 0.0
        %v1805 = vmax.f32 %v1343, 0.0
        %v1806 = vmax.f32 %v1521, 0.0
        %v1807 = vmax.f32 %v1699, 0.0
        %v1808 = vmax.f32 %v1168, 0.0
        %v1809 = vmax.f32 %v1346, 0.0
        %v1810 = vmax.f32 %v1524, 0.0
        %v1811 = vmax.f32 %v1702, 0.0
        %v1812 = vmax.f32 %v1170, 0.0
        %v1813 = vmax.f32 %v1348, 0.0
        %v1814 = vmax.f32 %v1526, 0.0
        %v1815 = vmax.f32 %v1704, 0.0
        %v1816 = vmax.f32 %v1173, 0.0
        %v1817 = vmax.f32 %v1351, 0.0
        %v1818 = vmax.f32 %v1529, 0.0
        %v1819 = vmax.f32 %v1707, 0.0
        %v1820 = vmax.f32 %v1175, 0.0
        %v1821 = vmax.f32 %v1353, 0.0
        %v1822 = vmax.f32 %v1531, 0.0
        %v1823 = vmax.f32 %v1709, 0.0
        %v1824 = vmax.f32 %v1178, 0.0
        %v1825 = vmax.f32 %v1356, 0.0
        %v1826 = vmax.f32 %v1534, 0.0
        %v1827 = vmax.f32 %v1712, 0.0
        %v1828 = vmax.f32 %v1180, 0.0
        %v1829 = vmax.f32 %v1358, 0.0
        %v1830 = vmax.f32 %v1536, 0.0
        %v1831 = vmax.f32 %v1714, 0.0
        %v1832 = vmax.f32 %v1183, 0.0
        %v1833 = vmax.f32 %v1361, 0.0
        %v1834 = vmax.f32 %v1539, 0.0
        %v1835 = vmax.f32 %v1717, 0.0
        %v1836 = vmax.f32 %v1185, 0.0
        %v1837 = vmax.f32 %v1363, 0.0
        %v1838 = vmax.f32 %v1541, 0.0
        %v1839 = vmax.f32 %v1719, 0.0
        %v1840 = vmax.f32 %v1188, 0.0
        %v1841 = vmax.f32 %v1366, 0.0
        %v1842 = vmax.f32 %v1544, 0.0
        %v1843 = vmax.f32 %v1722, 0.0
        %v1844 = vmax.f32 %v1190, 0.0
        %v1845 = vmax.f32 %v1368, 0.0
        %v1846 = vmax.f32 %v1546, 0.0
        %v1847 = vmax.f32 %v1724, 0.0
        %v1848 = vmax.f32 %v1193, 0.0
        %v1849 = vmax.f32 %v1371, 0.0
        %v1850 = vmax.f32 %v1549, 0.0
        %v1851 = vmax.f32 %v1727, 0.0
        %v1852 = vmax.f32 %v1195, 0.0
        %v1853 = vmax.f32 %v1373, 0.0
        %v1854 = vmax.f32 %v1551, 0.0
        %v1855 = vmax.f32 %v1729, 0.0
        %v1856 = vmax.f32 %v1198, 0.0
        %v1857 = vmax.f32 %v1376, 0.0
        %v1858 = vmax.f32 %v1554, 0.0
        %v1859 = vmax.f32 %v1732, 0.0
        %v1860 = vmax.f32 %v1200, 0.0
        %v1861 = vmax.f32 %v1378, 0.0
        %v1862 = vmax.f32 %v1556, 0.0
        %v1863 = vmax.f32 %v1734, 0.0
        %v1864 = vpack.c.bf16 %v1740, %v1736
        %v1865 = vpack.c.bf16 %v1741, %v1737
        %v1866 = vpack.c.bf16 %v1742, %v1738
        %v1867 = vpack.c.bf16 %v1743, %v1739
        %v1868 = vpack.c.bf16 %v1748, %v1744
        %v1869 = vpack.c.bf16 %v1749, %v1745
        %v1870 = vpack.c.bf16 %v1750, %v1746
        %v1871 = vpack.c.bf16 %v1751, %v1747
        %v1872 = vpack.c.bf16 %v1756, %v1752
        %v1873 = vpack.c.bf16 %v1757, %v1753
        %v1874 = vpack.c.bf16 %v1758, %v1754
        %v1875 = vpack.c.bf16 %v1759, %v1755
        %v1876 = vpack.c.bf16 %v1764, %v1760
        %v1877 = vpack.c.bf16 %v1765, %v1761
        %v1878 = vpack.c.bf16 %v1766, %v1762
        %v1879 = vpack.c.bf16 %v1767, %v1763
        %v1880 = vpack.c.bf16 %v1772, %v1768
        %v1881 = vpack.c.bf16 %v1773, %v1769
        %v1882 = vpack.c.bf16 %v1774, %v1770
        %v1883 = vpack.c.bf16 %v1775, %v1771
        %v1884 = vpack.c.bf16 %v1780, %v1776
        %v1885 = vpack.c.bf16 %v1781, %v1777
        %v1886 = vpack.c.bf16 %v1782, %v1778
        %v1887 = vpack.c.bf16 %v1783, %v1779
        %v1888 = vpack.c.bf16 %v1788, %v1784
        %v1889 = vpack.c.bf16 %v1789, %v1785
        %v1890 = vpack.c.bf16 %v1790, %v1786
        %v1891 = vpack.c.bf16 %v1791, %v1787
        %v1892 = vpack.c.bf16 %v1796, %v1792
        %v1893 = vpack.c.bf16 %v1797, %v1793
        %v1894 = vpack.c.bf16 %v1798, %v1794
        %v1895 = vpack.c.bf16 %v1799, %v1795
        %v1896 = vpack.c.bf16 %v1804, %v1800
        %v1897 = vpack.c.bf16 %v1805, %v1801
        %v1898 = vpack.c.bf16 %v1806, %v1802
        %v1899 = vpack.c.bf16 %v1807, %v1803
        %v1900 = vpack.c.bf16 %v1812, %v1808
        %v1901 = vpack.c.bf16 %v1813, %v1809
        %v1902 = vpack.c.bf16 %v1814, %v1810
        %v1903 = vpack.c.bf16 %v1815, %v1811
        %v1904 = vpack.c.bf16 %v1820, %v1816
        %v1905 = vpack.c.bf16 %v1821, %v1817
        %v1906 = vpack.c.bf16 %v1822, %v1818
        %v1907 = vpack.c.bf16 %v1823, %v1819
        %v1908 = vpack.c.bf16 %v1828, %v1824
        %v1909 = vpack.c.bf16 %v1829, %v1825
        %v1910 = vpack.c.bf16 %v1830, %v1826
        %v1911 = vpack.c.bf16 %v1831, %v1827
        %v1912 = vpack.c.bf16 %v1836, %v1832
        %v1913 = vpack.c.bf16 %v1837, %v1833
        %v1914 = vpack.c.bf16 %v1838, %v1834
        %v1915 = vpack.c.bf16 %v1839, %v1835
        %v1916 = vpack.c.bf16 %v1844, %v1840
        %v1917 = vpack.c.bf16 %v1845, %v1841
        %v1918 = vpack.c.bf16 %v1846, %v1842
        %v1919 = vpack.c.bf16 %v1847, %v1843
        %v1920 = vpack.c.bf16 %v1852, %v1848
        %v1921 = vpack.c.bf16 %v1853, %v1849
        %v1922 = vpack.c.bf16 %v1854, %v1850
        %v1923 = vpack.c.bf16 %v1855, %v1851
        %v1924 = vpack.c.bf16 %v1860, %v1856
        %v1925 = vpack.c.bf16 %v1861, %v1857
        %v1926 = vpack.c.bf16 %v1862, %v1858
        %v1927 = vpack.c.bf16 %v1863, %v1859
        %v1928 = vld [vmem:[#allocation6] sm:$0xff]
        %v1929 = vld [vmem:[#allocation6 + $0x8] sm:$0xff]
        %v1930 = vld [vmem:[#allocation6 + $0x10] sm:$0xff]
        %v1931 = vld [vmem:[#allocation6 + $0x18] sm:$0xff]
        %v1932 = vld [vmem:[#allocation6 + $0x20] sm:$0xff]
        %v1933 = vld [vmem:[#allocation6 + $0x28] sm:$0xff]
        %v1934 = vld [vmem:[#allocation6 + $0x30] sm:$0xff]
        %v1935 = vld [vmem:[#allocation6 + $0x38] sm:$0xff]
        %v1936 = vld [vmem:[#allocation6 + $0x40] sm:$0xff]
        %v1937 = vld [vmem:[#allocation6 + $0x48] sm:$0xff]
        %v1938 = vld [vmem:[#allocation6 + $0x50] sm:$0xff]
        %v1939 = vld [vmem:[#allocation6 + $0x58] sm:$0xff]
        %v1940 = vld [vmem:[#allocation6 + $0x60] sm:$0xff]
        %v1941 = vld [vmem:[#allocation6 + $0x68] sm:$0xff]
        %v1942 = vld [vmem:[#allocation6 + $0x70] sm:$0xff]
        %v1943 = vld [vmem:[#allocation6 + $0x78] sm:$0xff]
        %v1944 = vld [vmem:[%s4] sm:$0xff]
        %v1945 = vld [vmem:[%s4 + $0x8] sm:$0xff]
        %v1946 = vld [vmem:[%s4 + $0x10] sm:$0xff]
        %v1947 = vld [vmem:[%s4 + $0x18] sm:$0xff]
        %v1948 = vld [vmem:[%s4 + $0x20] sm:$0xff]
        %v1949 = vld [vmem:[%s4 + $0x28] sm:$0xff]
        %v1950 = vld [vmem:[%s4 + $0x30] sm:$0xff]
        %v1951 = vld [vmem:[%s4 + $0x38] sm:$0xff]
        %v1952 = vld [vmem:[%s4 + $0x40] sm:$0xff]
        %v1953 = vld [vmem:[%s4 + $0x48] sm:$0xff]
        %v1954 = vld [vmem:[%s4 + $0x50] sm:$0xff]
        %v1955 = vld [vmem:[%s4 + $0x58] sm:$0xff]
        %v1956 = vld [vmem:[%s4 + $0x60] sm:$0xff]
        %v1957 = vld [vmem:[%s4 + $0x68] sm:$0xff]
        %v1958 = vld [vmem:[%s4 + $0x70] sm:$0xff]
        %v1959 = vld [vmem:[%s4 + $0x78] sm:$0xff]
        %1961 = vset.pattern.permute.xlu0 0
        %1962 = vperm.xlu0 %1961, %v1944
        %v1963 = vpop.permute.xlu0 %1962
        %1966 = vset.pattern.permute.xlu0 0
        %1967 = vperm.xlu0 %1966, %v1945
        %v1968 = vpop.permute.xlu0 %1967
        %1971 = vset.pattern.permute.xlu0 0
        %1972 = vperm.xlu0 %1971, %v1946
        %v1973 = vpop.permute.xlu0 %1972
        %1976 = vset.pattern.permute.xlu0 0
        %1977 = vperm.xlu0 %1976, %v1947
        %v1978 = vpop.permute.xlu0 %1977
        %1981 = vset.pattern.permute.xlu0 0
        %1982 = vperm.xlu0 %1981, %v1948
        %v1983 = vpop.permute.xlu0 %1982
        %1986 = vset.pattern.permute.xlu0 0
        %1987 = vperm.xlu0 %1986, %v1949
        %v1988 = vpop.permute.xlu0 %1987
        %1991 = vset.pattern.permute.xlu0 0
        %1992 = vperm.xlu0 %1991, %v1950
        %v1993 = vpop.permute.xlu0 %1992
        %1996 = vset.pattern.permute.xlu0 0
        %1997 = vperm.xlu0 %1996, %v1951
        %v1998 = vpop.permute.xlu0 %1997
        %2001 = vset.pattern.permute.xlu0 0
        %2002 = vperm.xlu0 %2001, %v1952
        %v2003 = vpop.permute.xlu0 %2002
        %2006 = vset.pattern.permute.xlu0 0
        %2007 = vperm.xlu0 %2006, %v1953
        %v2008 = vpop.permute.xlu0 %2007
        %2011 = vset.pattern.permute.xlu0 0
        %2012 = vperm.xlu0 %2011, %v1954
        %v2013 = vpop.permute.xlu0 %2012
        %2016 = vset.pattern.permute.xlu0 0
        %2017 = vperm.xlu0 %2016, %v1955
        %v2018 = vpop.permute.xlu0 %2017
        %2021 = vset.pattern.permute.xlu0 0
        %2022 = vperm.xlu0 %2021, %v1956
        %v2023 = vpop.permute.xlu0 %2022
        %2026 = vset.pattern.permute.xlu0 0
        %2027 = vperm.xlu0 %2026, %v1957
        %v2028 = vpop.permute.xlu0 %2027
        %2031 = vset.pattern.permute.xlu0 0
        %2032 = vperm.xlu0 %2031, %v1958
        %v2033 = vpop.permute.xlu0 %2032
        %2036 = vset.pattern.permute.xlu0 0
        %2037 = vperm.xlu0 %2036, %v1959
        %v2038 = vpop.permute.xlu0 %2037
        %v2056 = vunpack.c.l.b16 %v1928
        %v2057 = vunpack.c.h.b16 %v1928
        %v2058 = vunpack.c.l.b16 %v1929
        %v2059 = vunpack.c.h.b16 %v1929
        %v2060 = vunpack.c.l.b16 %v1930
        %v2061 = vunpack.c.h.b16 %v1930
        %v2062 = vunpack.c.l.b16 %v1931
        %v2063 = vunpack.c.h.b16 %v1931
        %v2064 = vunpack.c.l.b16 %v1932
        %v2065 = vunpack.c.h.b16 %v1932
        %v2066 = vunpack.c.l.b16 %v1933
        %v2067 = vunpack.c.h.b16 %v1933
        %v2068 = vunpack.c.l.b16 %v1934
        %v2069 = vunpack.c.h.b16 %v1934
        %v2070 = vunpack.c.l.b16 %v1935
        %v2071 = vunpack.c.h.b16 %v1935
        %v2072 = vunpack.c.l.b16 %v1936
        %v2073 = vunpack.c.h.b16 %v1936
        %v2074 = vunpack.c.l.b16 %v1937
        %v2075 = vunpack.c.h.b16 %v1937
        %v2076 = vunpack.c.l.b16 %v1938
        %v2077 = vunpack.c.h.b16 %v1938
        %v2078 = vunpack.c.l.b16 %v1939
        %v2079 = vunpack.c.h.b16 %v1939
        %v2080 = vunpack.c.l.b16 %v1940
        %v2081 = vunpack.c.h.b16 %v1940
        %v2082 = vunpack.c.l.b16 %v1941
        %v2083 = vunpack.c.h.b16 %v1941
        %v2084 = vunpack.c.l.b16 %v1942
        %v2085 = vunpack.c.h.b16 %v1942
        %v2086 = vunpack.c.l.b16 %v1943
        %v2087 = vunpack.c.h.b16 %v1943
        %v2088 = vpack.c.b16 %v2058, %v2056
        %v2089 = vpack.c.b16 %v2059, %v2057
        %v2090 = vpack.c.b16 %v2062, %v2060
        %v2091 = vpack.c.b16 %v2063, %v2061
        %v2092 = vpack.c.b16 %v2066, %v2064
        %v2093 = vpack.c.b16 %v2067, %v2065
        %v2094 = vpack.c.b16 %v2070, %v2068
        %v2095 = vpack.c.b16 %v2071, %v2069
        %v2096 = vpack.c.b16 %v2074, %v2072
        %v2097 = vpack.c.b16 %v2075, %v2073
        %v2098 = vpack.c.b16 %v2078, %v2076
        %v2099 = vpack.c.b16 %v2079, %v2077
        %v2100 = vpack.c.b16 %v2082, %v2080
        %v2101 = vpack.c.b16 %v2083, %v2081
        %v2102 = vpack.c.b16 %v2086, %v2084
        %v2103 = vpack.c.b16 %v2087, %v2085
        %2120 = vmatpush.bf16.msra.mxu0 %v1892
        %2121 = vmatpush.bf16.msra.mxu0 %v1888
        %2122 = vmatpush.bf16.msra.mxu0 %v1884
        %2123 = vmatpush.bf16.msra.mxu0 %v1880
        %2124 = vmatpush.bf16.msra.mxu0 %v1876
        %2125 = vmatpush.bf16.msra.mxu0 %v1872
        %2126 = vmatpush.bf16.msra.mxu0 %v1868
        %2127 = vmatpush.bf16.msra.mxu0 %v1864
        %2128 = vmatmul.bf16.gmra.mxu0 %v2088
        %v2129 = vpop.f32.mrf.mxu0
        %v2130 = vadd.f32 %v1963, %v2129
        %v2131 = vpop.f32.mrf.mxu0
        %v2132 = vadd.f32 %v1968, %v2131
        %2133 = vmatmul.bf16.gmra.mxu0 %v2090
        %v2134 = vpop.f32.mrf.mxu0
        %v2135 = vadd.f32 %v1973, %v2134
        %v2136 = vpop.f32.mrf.mxu0
        %v2137 = vadd.f32 %v1978, %v2136
        %2138 = vmatmul.bf16.gmra.mxu0 %v2092
        %v2139 = vpop.f32.mrf.mxu0
        %v2140 = vadd.f32 %v1983, %v2139
        %v2141 = vpop.f32.mrf.mxu0
        %v2142 = vadd.f32 %v1988, %v2141
        %2143 = vmatmul.bf16.gmra.mxu0 %v2094
        %v2144 = vpop.f32.mrf.mxu0
        %v2145 = vadd.f32 %v1993, %v2144
        %v2146 = vpop.f32.mrf.mxu0
        %v2147 = vadd.f32 %v1998, %v2146
        %2148 = vmatmul.bf16.gmra.mxu0 %v2096
        %v2149 = vpop.f32.mrf.mxu0
        %v2150 = vadd.f32 %v2003, %v2149
        %v2151 = vpop.f32.mrf.mxu0
        %v2152 = vadd.f32 %v2008, %v2151
        %2153 = vmatmul.bf16.gmra.mxu0 %v2098
        %v2154 = vpop.f32.mrf.mxu0
        %v2155 = vadd.f32 %v2013, %v2154
        %v2156 = vpop.f32.mrf.mxu0
        %v2157 = vadd.f32 %v2018, %v2156
        %2158 = vmatmul.bf16.gmra.mxu0 %v2100
        %v2159 = vpop.f32.mrf.mxu0
        %v2160 = vadd.f32 %v2023, %v2159
        %v2161 = vpop.f32.mrf.mxu0
        %v2162 = vadd.f32 %v2028, %v2161
        %2163 = vmatmul.bf16.gmra.mxu0 %v2102
        %v2164 = vpop.f32.mrf.mxu0
        %v2165 = vadd.f32 %v2033, %v2164
        %v2166 = vpop.f32.mrf.mxu0
        %v2167 = vadd.f32 %v2038, %v2166
        %2168 = vdwg.mxu0
        %2169 = vmatpush.bf16.msra.mxu0 %v1924
        %2170 = vmatpush.bf16.msra.mxu0 %v1920
        %2171 = vmatpush.bf16.msra.mxu0 %v1916
        %2172 = vmatpush.bf16.msra.mxu0 %v1912
        %2173 = vmatpush.bf16.msra.mxu0 %v1908
        %2174 = vmatpush.bf16.msra.mxu0 %v1904
        %2175 = vmatpush.bf16.msra.mxu0 %v1900
        %2176 = vmatpush.bf16.msra.mxu0 %v1896
        %2177 = vmatmul.bf16.gmra.mxu0 %v2089
        %v2178 = vpop.f32.mrf.mxu0
        %v2179 = vadd.f32 %v2130, %v2178
        %v2180 = vpop.f32.mrf.mxu0
        %v2181 = vadd.f32 %v2132, %v2180
        %2182 = vmatmul.bf16.gmra.mxu0 %v2091
        %v2183 = vpop.f32.mrf.mxu0
        %v2184 = vadd.f32 %v2135, %v2183
        %v2185 = vpop.f32.mrf.mxu0
        %v2186 = vadd.f32 %v2137, %v2185
        %2187 = vmatmul.bf16.gmra.mxu0 %v2093
        %v2188 = vpop.f32.mrf.mxu0
        %v2189 = vadd.f32 %v2140, %v2188
        %v2190 = vpop.f32.mrf.mxu0
        %v2191 = vadd.f32 %v2142, %v2190
        %2192 = vmatmul.bf16.gmra.mxu0 %v2095
        %v2193 = vpop.f32.mrf.mxu0
        %v2194 = vadd.f32 %v2145, %v2193
        %v2195 = vpop.f32.mrf.mxu0
        %v2196 = vadd.f32 %v2147, %v2195
        %2197 = vmatmul.bf16.gmra.mxu0 %v2097
        %v2198 = vpop.f32.mrf.mxu0
        %v2199 = vadd.f32 %v2150, %v2198
        %v2200 = vpop.f32.mrf.mxu0
        %v2201 = vadd.f32 %v2152, %v2200
        %2202 = vmatmul.bf16.gmra.mxu0 %v2099
        %v2203 = vpop.f32.mrf.mxu0
        %v2204 = vadd.f32 %v2155, %v2203
        %v2205 = vpop.f32.mrf.mxu0
        %v2206 = vadd.f32 %v2157, %v2205
        %2207 = vmatmul.bf16.gmra.mxu0 %v2101
        %v2208 = vpop.f32.mrf.mxu0
        %v2209 = vadd.f32 %v2160, %v2208
        %v2210 = vpop.f32.mrf.mxu0
        %v2211 = vadd.f32 %v2162, %v2210
        %2212 = vmatmul.bf16.gmra.mxu0 %v2103
        %v2213 = vpop.f32.mrf.mxu0
        %v2214 = vadd.f32 %v2165, %v2213
        %v2215 = vpop.f32.mrf.mxu0
        %v2216 = vadd.f32 %v2167, %v2215
        %2217 = vdwg.mxu0
        %2218 = vmatpush.bf16.msra.mxu0 %v1893
        %2219 = vmatpush.bf16.msra.mxu0 %v1889
        %2220 = vmatpush.bf16.msra.mxu0 %v1885
        %2221 = vmatpush.bf16.msra.mxu0 %v1881
        %2222 = vmatpush.bf16.msra.mxu0 %v1877
        %2223 = vmatpush.bf16.msra.mxu0 %v1873
        %2224 = vmatpush.bf16.msra.mxu0 %v1869
        %2225 = vmatpush.bf16.msra.mxu0 %v1865
        %2226 = vmatmul.bf16.gmra.mxu0 %v2088
        %v2227 = vpop.f32.mrf.mxu0
        %v2228 = vadd.f32 %v1963, %v2227
        %v2229 = vpop.f32.mrf.mxu0
        %v2230 = vadd.f32 %v1968, %v2229
        %2231 = vmatmul.bf16.gmra.mxu0 %v2090
        %v2232 = vpop.f32.mrf.mxu0
        %v2233 = vadd.f32 %v1973, %v2232
        %v2234 = vpop.f32.mrf.mxu0
        %v2235 = vadd.f32 %v1978, %v2234
        %2236 = vmatmul.bf16.gmra.mxu0 %v2092
        %v2237 = vpop.f32.mrf.mxu0
        %v2238 = vadd.f32 %v1983, %v2237
        %v2239 = vpop.f32.mrf.mxu0
        %v2240 = vadd.f32 %v1988, %v2239
        %2241 = vmatmul.bf16.gmra.mxu0 %v2094
        %v2242 = vpop.f32.mrf.mxu0
        %v2243 = vadd.f32 %v1993, %v2242
        %v2244 = vpop.f32.mrf.mxu0
        %v2245 = vadd.f32 %v1998, %v2244
        %2246 = vmatmul.bf16.gmra.mxu0 %v2096
        %v2247 = vpop.f32.mrf.mxu0
        %v2248 = vadd.f32 %v2003, %v2247
        %v2249 = vpop.f32.mrf.mxu0
        %v2250 = vadd.f32 %v2008, %v2249
        %2251 = vmatmul.bf16.gmra.mxu0 %v2098
        %v2252 = vpop.f32.mrf.mxu0
        %v2253 = vadd.f32 %v2013, %v2252
        %v2254 = vpop.f32.mrf.mxu0
        %v2255 = vadd.f32 %v2018, %v2254
        %2256 = vmatmul.bf16.gmra.mxu0 %v2100
        %v2257 = vpop.f32.mrf.mxu0
        %v2258 = vadd.f32 %v2023, %v2257
        %v2259 = vpop.f32.mrf.mxu0
        %v2260 = vadd.f32 %v2028, %v2259
        %2261 = vmatmul.bf16.gmra.mxu0 %v2102
        %v2262 = vpop.f32.mrf.mxu0
        %v2263 = vadd.f32 %v2033, %v2262
        %v2264 = vpop.f32.mrf.mxu0
        %v2265 = vadd.f32 %v2038, %v2264
        %2266 = vdwg.mxu0
        %2267 = vmatpush.bf16.msra.mxu0 %v1925
        %2268 = vmatpush.bf16.msra.mxu0 %v1921
        %2269 = vmatpush.bf16.msra.mxu0 %v1917
        %2270 = vmatpush.bf16.msra.mxu0 %v1913
        %2271 = vmatpush.bf16.msra.mxu0 %v1909
        %2272 = vmatpush.bf16.msra.mxu0 %v1905
        %2273 = vmatpush.bf16.msra.mxu0 %v1901
        %2274 = vmatpush.bf16.msra.mxu0 %v1897
        %2275 = vmatmul.bf16.gmra.mxu0 %v2089
        %v2276 = vpop.f32.mrf.mxu0
        %v2277 = vadd.f32 %v2228, %v2276
        %v2278 = vpop.f32.mrf.mxu0
        %v2279 = vadd.f32 %v2230, %v2278
        %2280 = vmatmul.bf16.gmra.mxu0 %v2091
        %v2281 = vpop.f32.mrf.mxu0
        %v2282 = vadd.f32 %v2233, %v2281
        %v2283 = vpop.f32.mrf.mxu0
        %v2284 = vadd.f32 %v2235, %v2283
        %2285 = vmatmul.bf16.gmra.mxu0 %v2093
        %v2286 = vpop.f32.mrf.mxu0
        %v2287 = vadd.f32 %v2238, %v2286
        %v2288 = vpop.f32.mrf.mxu0
        %v2289 = vadd.f32 %v2240, %v2288
        %2290 = vmatmul.bf16.gmra.mxu0 %v2095
        %v2291 = vpop.f32.mrf.mxu0
        %v2292 = vadd.f32 %v2243, %v2291
        %v2293 = vpop.f32.mrf.mxu0
        %v2294 = vadd.f32 %v2245, %v2293
        %2295 = vmatmul.bf16.gmra.mxu0 %v2097
        %v2296 = vpop.f32.mrf.mxu0
        %v2297 = vadd.f32 %v2248, %v2296
        %v2298 = vpop.f32.mrf.mxu0
        %v2299 = vadd.f32 %v2250, %v2298
        %2300 = vmatmul.bf16.gmra.mxu0 %v2099
        %v2301 = vpop.f32.mrf.mxu0
        %v2302 = vadd.f32 %v2253, %v2301
        %v2303 = vpop.f32.mrf.mxu0
        %v2304 = vadd.f32 %v2255, %v2303
        %2305 = vmatmul.bf16.gmra.mxu0 %v2101
        %v2306 = vpop.f32.mrf.mxu0
        %v2307 = vadd.f32 %v2258, %v2306
        %v2308 = vpop.f32.mrf.mxu0
        %v2309 = vadd.f32 %v2260, %v2308
        %2310 = vmatmul.bf16.gmra.mxu0 %v2103
        %v2311 = vpop.f32.mrf.mxu0
        %v2312 = vadd.f32 %v2263, %v2311
        %v2313 = vpop.f32.mrf.mxu0
        %v2314 = vadd.f32 %v2265, %v2313
        %2315 = vdwg.mxu0
        %2316 = vmatpush.bf16.msra.mxu0 %v1894
        %2317 = vmatpush.bf16.msra.mxu0 %v1890
        %2318 = vmatpush.bf16.msra.mxu0 %v1886
        %2319 = vmatpush.bf16.msra.mxu0 %v1882
        %2320 = vmatpush.bf16.msra.mxu0 %v1878
        %2321 = vmatpush.bf16.msra.mxu0 %v1874
        %2322 = vmatpush.bf16.msra.mxu0 %v1870
        %2323 = vmatpush.bf16.msra.mxu0 %v1866
        %2324 = vmatmul.bf16.gmra.mxu0 %v2088
        %v2325 = vpop.f32.mrf.mxu0
        %v2326 = vadd.f32 %v1963, %v2325
        %v2327 = vpop.f32.mrf.mxu0
        %v2328 = vadd.f32 %v1968, %v2327
        %2329 = vmatmul.bf16.gmra.mxu0 %v2090
        %v2330 = vpop.f32.mrf.mxu0
        %v2331 = vadd.f32 %v1973, %v2330
        %v2332 = vpop.f32.mrf.mxu0
        %v2333 = vadd.f32 %v1978, %v2332
        %2334 = vmatmul.bf16.gmra.mxu0 %v2092
        %v2335 = vpop.f32.mrf.mxu0
        %v2336 = vadd.f32 %v1983, %v2335
        %v2337 = vpop.f32.mrf.mxu0
        %v2338 = vadd.f32 %v1988, %v2337
        %2339 = vmatmul.bf16.gmra.mxu0 %v2094
        %v2340 = vpop.f32.mrf.mxu0
        %v2341 = vadd.f32 %v1993, %v2340
        %v2342 = vpop.f32.mrf.mxu0
        %v2343 = vadd.f32 %v1998, %v2342
        %2344 = vmatmul.bf16.gmra.mxu0 %v2096
        %v2345 = vpop.f32.mrf.mxu0
        %v2346 = vadd.f32 %v2003, %v2345
        %v2347 = vpop.f32.mrf.mxu0
        %v2348 = vadd.f32 %v2008, %v2347
        %2349 = vmatmul.bf16.gmra.mxu0 %v2098
        %v2350 = vpop.f32.mrf.mxu0
        %v2351 = vadd.f32 %v2013, %v2350
        %v2352 = vpop.f32.mrf.mxu0
        %v2353 = vadd.f32 %v2018, %v2352
        %2354 = vmatmul.bf16.gmra.mxu0 %v2100
        %v2355 = vpop.f32.mrf.mxu0
        %v2356 = vadd.f32 %v2023, %v2355
        %v2357 = vpop.f32.mrf.mxu0
        %v2358 = vadd.f32 %v2028, %v2357
        %2359 = vmatmul.bf16.gmra.mxu0 %v2102
        %v2360 = vpop.f32.mrf.mxu0
        %v2361 = vadd.f32 %v2033, %v2360
        %v2362 = vpop.f32.mrf.mxu0
        %v2363 = vadd.f32 %v2038, %v2362
        %2364 = vdwg.mxu0
        %2365 = vmatpush.bf16.msra.mxu0 %v1926
        %2366 = vmatpush.bf16.msra.mxu0 %v1922
        %2367 = vmatpush.bf16.msra.mxu0 %v1918
        %2368 = vmatpush.bf16.msra.mxu0 %v1914
        %2369 = vmatpush.bf16.msra.mxu0 %v1910
        %2370 = vmatpush.bf16.msra.mxu0 %v1906
        %2371 = vmatpush.bf16.msra.mxu0 %v1902
        %2372 = vmatpush.bf16.msra.mxu0 %v1898
        %2373 = vmatmul.bf16.gmra.mxu0 %v2089
        %v2374 = vpop.f32.mrf.mxu0
        %v2375 = vadd.f32 %v2326, %v2374
        %v2376 = vpop.f32.mrf.mxu0
        %v2377 = vadd.f32 %v2328, %v2376
        %2378 = vmatmul.bf16.gmra.mxu0 %v2091
        %v2379 = vpop.f32.mrf.mxu0
        %v2380 = vadd.f32 %v2331, %v2379
        %v2381 = vpop.f32.mrf.mxu0
        %v2382 = vadd.f32 %v2333, %v2381
        %2383 = vmatmul.bf16.gmra.mxu0 %v2093
        %v2384 = vpop.f32.mrf.mxu0
        %v2385 = vadd.f32 %v2336, %v2384
        %v2386 = vpop.f32.mrf.mxu0
        %v2387 = vadd.f32 %v2338, %v2386
        %2388 = vmatmul.bf16.gmra.mxu0 %v2095
        %v2389 = vpop.f32.mrf.mxu0
        %v2390 = vadd.f32 %v2341, %v2389
        %v2391 = vpop.f32.mrf.mxu0
        %v2392 = vadd.f32 %v2343, %v2391
        %2393 = vmatmul.bf16.gmra.mxu0 %v2097
        %v2394 = vpop.f32.mrf.mxu0
        %v2395 = vadd.f32 %v2346, %v2394
        %v2396 = vpop.f32.mrf.mxu0
        %v2397 = vadd.f32 %v2348, %v2396
        %2398 = vmatmul.bf16.gmra.mxu0 %v2099
        %v2399 = vpop.f32.mrf.mxu0
        %v2400 = vadd.f32 %v2351, %v2399
        %v2401 = vpop.f32.mrf.mxu0
        %v2402 = vadd.f32 %v2353, %v2401
        %2403 = vmatmul.bf16.gmra.mxu0 %v2101
        %v2404 = vpop.f32.mrf.mxu0
        %v2405 = vadd.f32 %v2356, %v2404
        %v2406 = vpop.f32.mrf.mxu0
        %v2407 = vadd.f32 %v2358, %v2406
        %2408 = vmatmul.bf16.gmra.mxu0 %v2103
        %v2409 = vpop.f32.mrf.mxu0
        %v2410 = vadd.f32 %v2361, %v2409
        %v2411 = vpop.f32.mrf.mxu0
        %v2412 = vadd.f32 %v2363, %v2411
        %2413 = vdwg.mxu0
        %2414 = vmatpush.bf16.msra.mxu0 %v1895
        %2415 = vmatpush.bf16.msra.mxu0 %v1891
        %2416 = vmatpush.bf16.msra.mxu0 %v1887
        %2417 = vmatpush.bf16.msra.mxu0 %v1883
        %2418 = vmatpush.bf16.msra.mxu0 %v1879
        %2419 = vmatpush.bf16.msra.mxu0 %v1875
        %2420 = vmatpush.bf16.msra.mxu0 %v1871
        %2421 = vmatpush.bf16.msra.mxu0 %v1867
        %2422 = vmatmul.bf16.gmra.mxu0 %v2088
        %v2423 = vpop.f32.mrf.mxu0
        %v2424 = vadd.f32 %v1963, %v2423
        %v2425 = vpop.f32.mrf.mxu0
        %v2426 = vadd.f32 %v1968, %v2425
        %2427 = vmatmul.bf16.gmra.mxu0 %v2090
        %v2428 = vpop.f32.mrf.mxu0
        %v2429 = vadd.f32 %v1973, %v2428
        %v2430 = vpop.f32.mrf.mxu0
        %v2431 = vadd.f32 %v1978, %v2430
        %2432 = vmatmul.bf16.gmra.mxu0 %v2092
        %v2433 = vpop.f32.mrf.mxu0
        %v2434 = vadd.f32 %v1983, %v2433
        %v2435 = vpop.f32.mrf.mxu0
        %v2436 = vadd.f32 %v1988, %v2435
        %2437 = vmatmul.bf16.gmra.mxu0 %v2094
        %v2438 = vpop.f32.mrf.mxu0
        %v2439 = vadd.f32 %v1993, %v2438
        %v2440 = vpop.f32.mrf.mxu0
        %v2441 = vadd.f32 %v1998, %v2440
        %2442 = vmatmul.bf16.gmra.mxu0 %v2096
        %v2443 = vpop.f32.mrf.mxu0
        %v2444 = vadd.f32 %v2003, %v2443
        %v2445 = vpop.f32.mrf.mxu0
        %v2446 = vadd.f32 %v2008, %v2445
        %2447 = vmatmul.bf16.gmra.mxu0 %v2098
        %v2448 = vpop.f32.mrf.mxu0
        %v2449 = vadd.f32 %v2013, %v2448
        %v2450 = vpop.f32.mrf.mxu0
        %v2451 = vadd.f32 %v2018, %v2450
        %2452 = vmatmul.bf16.gmra.mxu0 %v2100
        %v2453 = vpop.f32.mrf.mxu0
        %v2454 = vadd.f32 %v2023, %v2453
        %v2455 = vpop.f32.mrf.mxu0
        %v2456 = vadd.f32 %v2028, %v2455
        %2457 = vmatmul.bf16.gmra.mxu0 %v2102
        %v2458 = vpop.f32.mrf.mxu0
        %v2459 = vadd.f32 %v2033, %v2458
        %v2460 = vpop.f32.mrf.mxu0
        %v2461 = vadd.f32 %v2038, %v2460
        %2462 = vdwg.mxu0
        %2463 = vmatpush.bf16.msra.mxu0 %v1927
        %2464 = vmatpush.bf16.msra.mxu0 %v1923
        %2465 = vmatpush.bf16.msra.mxu0 %v1919
        %2466 = vmatpush.bf16.msra.mxu0 %v1915
        %2467 = vmatpush.bf16.msra.mxu0 %v1911
        %2468 = vmatpush.bf16.msra.mxu0 %v1907
        %2469 = vmatpush.bf16.msra.mxu0 %v1903
        %2470 = vmatpush.bf16.msra.mxu0 %v1899
        %2471 = vmatmul.bf16.gmra.mxu0 %v2089
        %v2472 = vpop.f32.mrf.mxu0
        %v2473 = vadd.f32 %v2424, %v2472
        %v2474 = vpop.f32.mrf.mxu0
        %v2475 = vadd.f32 %v2426, %v2474
        %2476 = vmatmul.bf16.gmra.mxu0 %v2091
        %v2477 = vpop.f32.mrf.mxu0
        %v2478 = vadd.f32 %v2429, %v2477
        %v2479 = vpop.f32.mrf.mxu0
        %v2480 = vadd.f32 %v2431, %v2479
        %2481 = vmatmul.bf16.gmra.mxu0 %v2093
        %v2482 = vpop.f32.mrf.mxu0
        %v2483 = vadd.f32 %v2434, %v2482
        %v2484 = vpop.f32.mrf.mxu0
        %v2485 = vadd.f32 %v2436, %v2484
        %2486 = vmatmul.bf16.gmra.mxu0 %v2095
        %v2487 = vpop.f32.mrf.mxu0
        %v2488 = vadd.f32 %v2439, %v2487
        %v2489 = vpop.f32.mrf.mxu0
        %v2490 = vadd.f32 %v2441, %v2489
        %2491 = vmatmul.bf16.gmra.mxu0 %v2097
        %v2492 = vpop.f32.mrf.mxu0
        %v2493 = vadd.f32 %v2444, %v2492
        %v2494 = vpop.f32.mrf.mxu0
        %v2495 = vadd.f32 %v2446, %v2494
        %2496 = vmatmul.bf16.gmra.mxu0 %v2099
        %v2497 = vpop.f32.mrf.mxu0
        %v2498 = vadd.f32 %v2449, %v2497
        %v2499 = vpop.f32.mrf.mxu0
        %v2500 = vadd.f32 %v2451, %v2499
        %2501 = vmatmul.bf16.gmra.mxu0 %v2101
        %v2502 = vpop.f32.mrf.mxu0
        %v2503 = vadd.f32 %v2454, %v2502
        %v2504 = vpop.f32.mrf.mxu0
        %v2505 = vadd.f32 %v2456, %v2504
        %2506 = vmatmul.bf16.gmra.mxu0 %v2103
        %v2507 = vpop.f32.mrf.mxu0
        %v2508 = vadd.f32 %v2459, %v2507
        %v2509 = vpop.f32.mrf.mxu0
        %v2510 = vadd.f32 %v2461, %v2509
        %2511 = vdwg.mxu0
        %v2512 = vmax.f32 %v2179, 0.0
        %v2513 = vmax.f32 %v2277, 0.0
        %v2514 = vmax.f32 %v2375, 0.0
        %v2515 = vmax.f32 %v2473, 0.0
        %v2516 = vmax.f32 %v2181, 0.0
        %v2517 = vmax.f32 %v2279, 0.0
        %v2518 = vmax.f32 %v2377, 0.0
        %v2519 = vmax.f32 %v2475, 0.0
        %v2520 = vmax.f32 %v2184, 0.0
        %v2521 = vmax.f32 %v2282, 0.0
        %v2522 = vmax.f32 %v2380, 0.0
        %v2523 = vmax.f32 %v2478, 0.0
        %v2524 = vmax.f32 %v2186, 0.0
        %v2525 = vmax.f32 %v2284, 0.0
        %v2526 = vmax.f32 %v2382, 0.0
        %v2527 = vmax.f32 %v2480, 0.0
        %v2528 = vmax.f32 %v2189, 0.0
        %v2529 = vmax.f32 %v2287, 0.0
        %v2530 = vmax.f32 %v2385, 0.0
        %v2531 = vmax.f32 %v2483, 0.0
        %v2532 = vmax.f32 %v2191, 0.0
        %v2533 = vmax.f32 %v2289, 0.0
        %v2534 = vmax.f32 %v2387, 0.0
        %v2535 = vmax.f32 %v2485, 0.0
        %v2536 = vmax.f32 %v2194, 0.0
        %v2537 = vmax.f32 %v2292, 0.0
        %v2538 = vmax.f32 %v2390, 0.0
        %v2539 = vmax.f32 %v2488, 0.0
        %v2540 = vmax.f32 %v2196, 0.0
        %v2541 = vmax.f32 %v2294, 0.0
        %v2542 = vmax.f32 %v2392, 0.0
        %v2543 = vmax.f32 %v2490, 0.0
        %v2544 = vmax.f32 %v2199, 0.0
        %v2545 = vmax.f32 %v2297, 0.0
        %v2546 = vmax.f32 %v2395, 0.0
        %v2547 = vmax.f32 %v2493, 0.0
        %v2548 = vmax.f32 %v2201, 0.0
        %v2549 = vmax.f32 %v2299, 0.0
        %v2550 = vmax.f32 %v2397, 0.0
        %v2551 = vmax.f32 %v2495, 0.0
        %v2552 = vmax.f32 %v2204, 0.0
        %v2553 = vmax.f32 %v2302, 0.0
        %v2554 = vmax.f32 %v2400, 0.0
        %v2555 = vmax.f32 %v2498, 0.0
        %v2556 = vmax.f32 %v2206, 0.0
        %v2557 = vmax.f32 %v2304, 0.0
        %v2558 = vmax.f32 %v2402, 0.0
        %v2559 = vmax.f32 %v2500, 0.0
        %v2560 = vmax.f32 %v2209, 0.0
        %v2561 = vmax.f32 %v2307, 0.0
        %v2562 = vmax.f32 %v2405, 0.0
        %v2563 = vmax.f32 %v2503, 0.0
        %v2564 = vmax.f32 %v2211, 0.0
        %v2565 = vmax.f32 %v2309, 0.0
        %v2566 = vmax.f32 %v2407, 0.0
        %v2567 = vmax.f32 %v2505, 0.0
        %v2568 = vmax.f32 %v2214, 0.0
        %v2569 = vmax.f32 %v2312, 0.0
        %v2570 = vmax.f32 %v2410, 0.0
        %v2571 = vmax.f32 %v2508, 0.0
        %v2572 = vmax.f32 %v2216, 0.0
        %v2573 = vmax.f32 %v2314, 0.0
        %v2574 = vmax.f32 %v2412, 0.0
        %v2575 = vmax.f32 %v2510, 0.0
        %v2576 = vpack.c.bf16 %v2516, %v2512
        %v2577 = vpack.c.bf16 %v2517, %v2513
        %v2578 = vpack.c.bf16 %v2518, %v2514
        %v2579 = vpack.c.bf16 %v2519, %v2515
        %v2580 = vpack.c.bf16 %v2524, %v2520
        %v2581 = vpack.c.bf16 %v2525, %v2521
        %v2582 = vpack.c.bf16 %v2526, %v2522
        %v2583 = vpack.c.bf16 %v2527, %v2523
        %v2584 = vpack.c.bf16 %v2532, %v2528
        %v2585 = vpack.c.bf16 %v2533, %v2529
        %v2586 = vpack.c.bf16 %v2534, %v2530
        %v2587 = vpack.c.bf16 %v2535, %v2531
        %v2588 = vpack.c.bf16 %v2540, %v2536
        %v2589 = vpack.c.bf16 %v2541, %v2537
        %v2590 = vpack.c.bf16 %v2542, %v2538
        %v2591 = vpack.c.bf16 %v2543, %v2539
        %v2592 = vpack.c.bf16 %v2548, %v2544
        %v2593 = vpack.c.bf16 %v2549, %v2545
        %v2594 = vpack.c.bf16 %v2550, %v2546
        %v2595 = vpack.c.bf16 %v2551, %v2547
        %v2596 = vpack.c.bf16 %v2556, %v2552
        %v2597 = vpack.c.bf16 %v2557, %v2553
        %v2598 = vpack.c.bf16 %v2558, %v2554
        %v2599 = vpack.c.bf16 %v2559, %v2555
        %v2600 = vpack.c.bf16 %v2564, %v2560
        %v2601 = vpack.c.bf16 %v2565, %v2561
        %v2602 = vpack.c.bf16 %v2566, %v2562
        %v2603 = vpack.c.bf16 %v2567, %v2563
        %v2604 = vpack.c.bf16 %v2572, %v2568
        %v2605 = vpack.c.bf16 %v2573, %v2569
        %v2606 = vpack.c.bf16 %v2574, %v2570
        %v2607 = vpack.c.bf16 %v2575, %v2571
        %v2608 = vld [vmem:[#allocation7] sm:$0xf]
        %v2609 = vld [vmem:[#allocation7 + $0x4] sm:$0xf]
        %v2610 = vld [vmem:[#allocation7 + $0x8] sm:$0xf]
        %v2611 = vld [vmem:[#allocation7 + $0xc] sm:$0xf]
        %v2612 = vld [vmem:[#allocation7 + $0x10] sm:$0xf]
        %v2613 = vld [vmem:[#allocation7 + $0x14] sm:$0xf]
        %v2614 = vld [vmem:[#allocation7 + $0x18] sm:$0xf]
        %v2615 = vld [vmem:[#allocation7 + $0x1c] sm:$0xf]
        %v2616 = vld [vmem:[%s6] sm:$0xff]
        %v2617 = vld [vmem:[%s6 + $0x8] sm:$0xff]
        %v2618 = vld [vmem:[%s6 + $0x10] sm:$0xff]
        %v2619 = vld [vmem:[%s6 + $0x18] sm:$0xff]
        %v2620 = vld [vmem:[%s6 + $0x20] sm:$0xff]
        %v2621 = vld [vmem:[%s6 + $0x28] sm:$0xff]
        %v2622 = vld [vmem:[%s6 + $0x30] sm:$0xff]
        %v2623 = vld [vmem:[%s6 + $0x38] sm:$0xff]
        %2625 = vset.pattern.permute.xlu0 0
        %2626 = vperm.xlu0 %2625, %v2616
        %v2627 = vpop.permute.xlu0 %2626
        %2630 = vset.pattern.permute.xlu0 0
        %2631 = vperm.xlu0 %2630, %v2617
        %v2632 = vpop.permute.xlu0 %2631
        %2635 = vset.pattern.permute.xlu0 0
        %2636 = vperm.xlu0 %2635, %v2618
        %v2637 = vpop.permute.xlu0 %2636
        %2640 = vset.pattern.permute.xlu0 0
        %2641 = vperm.xlu0 %2640, %v2619
        %v2642 = vpop.permute.xlu0 %2641
        %2645 = vset.pattern.permute.xlu0 0
        %2646 = vperm.xlu0 %2645, %v2620
        %v2647 = vpop.permute.xlu0 %2646
        %2650 = vset.pattern.permute.xlu0 0
        %2651 = vperm.xlu0 %2650, %v2621
        %v2652 = vpop.permute.xlu0 %2651
        %2655 = vset.pattern.permute.xlu0 0
        %2656 = vperm.xlu0 %2655, %v2622
        %v2657 = vpop.permute.xlu0 %2656
        %2660 = vset.pattern.permute.xlu0 0
        %2661 = vperm.xlu0 %2660, %v2623
        %v2662 = vpop.permute.xlu0 %2661
        %v2672 = vunpack.c.l.b16 %v2608
        %v2673 = vunpack.c.l.b16 %v2609
        %v2674 = vunpack.c.l.b16 %v2610
        %v2675 = vunpack.c.l.b16 %v2611
        %v2676 = vunpack.c.l.b16 %v2612
        %v2677 = vunpack.c.l.b16 %v2613
        %v2678 = vunpack.c.l.b16 %v2614
        %v2679 = vunpack.c.l.b16 %v2615
        %v2680 = vpack.c.b16 %v2673, %v2672
        %v2681 = vpack.c.b16 %v2675, %v2674
        %v2682 = vpack.c.b16 %v2677, %v2676
        %v2683 = vpack.c.b16 %v2679, %v2678
        %2688 = vmatpush.bf16.msra.mxu0 %v2604
        %2689 = vmatpush.bf16.msra.mxu0 %v2600
        %2690 = vmatpush.bf16.msra.mxu0 %v2596
        %2691 = vmatpush.bf16.msra.mxu0 %v2592
        %2692 = vmatpush.bf16.msra.mxu0 %v2588
        %2693 = vmatpush.bf16.msra.mxu0 %v2584
        %2694 = vmatpush.bf16.msra.mxu0 %v2580
        %2695 = vmatpush.bf16.msra.mxu0 %v2576
        %2696 = vmatmul.bf16.gmra.mxu0 %v2680
        %v2697 = vpop.f32.mrf.mxu0
        %v2698 = vadd.f32 %v2627, %v2697
        %v2699 = vpop.f32.mrf.mxu0
        %v2700 = vadd.f32 %v2632, %v2699
        %2701 = vmatmul.bf16.gmra.mxu0 %v2681
        %v2702 = vpop.f32.mrf.mxu0
        %v2703 = vadd.f32 %v2637, %v2702
        %v2704 = vpop.f32.mrf.mxu0
        %v2705 = vadd.f32 %v2642, %v2704
        %2706 = vmatmul.bf16.gmra.mxu0 %v2682
        %v2707 = vpop.f32.mrf.mxu0
        %v2708 = vadd.f32 %v2647, %v2707
        %v2709 = vpop.f32.mrf.mxu0
        %v2710 = vadd.f32 %v2652, %v2709
        %2711 = vmatmul.bf16.gmra.mxu0 %v2683
        %v2712 = vpop.f32.mrf.mxu0
        %v2713 = vadd.f32 %v2657, %v2712
        %v2714 = vpop.f32.mrf.mxu0
        %v2715 = vadd.f32 %v2662, %v2714
        %2716 = vdwg.mxu0
        %2717 = vmatpush.bf16.msra.mxu0 %v2605
        %2718 = vmatpush.bf16.msra.mxu0 %v2601
        %2719 = vmatpush.bf16.msra.mxu0 %v2597
        %2720 = vmatpush.bf16.msra.mxu0 %v2593
        %2721 = vmatpush.bf16.msra.mxu0 %v2589
        %2722 = vmatpush.bf16.msra.mxu0 %v2585
        %2723 = vmatpush.bf16.msra.mxu0 %v2581
        %2724 = vmatpush.bf16.msra.mxu0 %v2577
        %2725 = vmatmul.bf16.gmra.mxu0 %v2680
        %v2726 = vpop.f32.mrf.mxu0
        %v2727 = vadd.f32 %v2627, %v2726
        %v2728 = vpop.f32.mrf.mxu0
        %v2729 = vadd.f32 %v2632, %v2728
        %2730 = vmatmul.bf16.gmra.mxu0 %v2681
        %v2731 = vpop.f32.mrf.mxu0
        %v2732 = vadd.f32 %v2637, %v2731
        %v2733 = vpop.f32.mrf.mxu0
        %v2734 = vadd.f32 %v2642, %v2733
        %2735 = vmatmul.bf16.gmra.mxu0 %v2682
        %v2736 = vpop.f32.mrf.mxu0
        %v2737 = vadd.f32 %v2647, %v2736
        %v2738 = vpop.f32.mrf.mxu0
        %v2739 = vadd.f32 %v2652, %v2738
        %2740 = vmatmul.bf16.gmra.mxu0 %v2683
        %v2741 = vpop.f32.mrf.mxu0
        %v2742 = vadd.f32 %v2657, %v2741
        %v2743 = vpop.f32.mrf.mxu0
        %v2744 = vadd.f32 %v2662, %v2743
        %2745 = vdwg.mxu0
        %2746 = vmatpush.bf16.msra.mxu0 %v2606
        %2747 = vmatpush.bf16.msra.mxu0 %v2602
        %2748 = vmatpush.bf16.msra.mxu0 %v2598
        %2749 = vmatpush.bf16.msra.mxu0 %v2594
        %2750 = vmatpush.bf16.msra.mxu0 %v2590
        %2751 = vmatpush.bf16.msra.mxu0 %v2586
        %2752 = vmatpush.bf16.msra.mxu0 %v2582
        %2753 = vmatpush.bf16.msra.mxu0 %v2578
        %2754 = vmatmul.bf16.gmra.mxu0 %v2680
        %v2755 = vpop.f32.mrf.mxu0
        %v2756 = vadd.f32 %v2627, %v2755
        %v2757 = vpop.f32.mrf.mxu0
        %v2758 = vadd.f32 %v2632, %v2757
        %2759 = vmatmul.bf16.gmra.mxu0 %v2681
        %v2760 = vpop.f32.mrf.mxu0
        %v2761 = vadd.f32 %v2637, %v2760
        %v2762 = vpop.f32.mrf.mxu0
        %v2763 = vadd.f32 %v2642, %v2762
        %2764 = vmatmul.bf16.gmra.mxu0 %v2682
        %v2765 = vpop.f32.mrf.mxu0
        %v2766 = vadd.f32 %v2647, %v2765
        %v2767 = vpop.f32.mrf.mxu0
        %v2768 = vadd.f32 %v2652, %v2767
        %2769 = vmatmul.bf16.gmra.mxu0 %v2683
        %v2770 = vpop.f32.mrf.mxu0
        %v2771 = vadd.f32 %v2657, %v2770
        %v2772 = vpop.f32.mrf.mxu0
        %v2773 = vadd.f32 %v2662, %v2772
        %2774 = vdwg.mxu0
        %2775 = vmatpush.bf16.msra.mxu0 %v2607
        %2776 = vmatpush.bf16.msra.mxu0 %v2603
        %2777 = vmatpush.bf16.msra.mxu0 %v2599
        %2778 = vmatpush.bf16.msra.mxu0 %v2595
        %2779 = vmatpush.bf16.msra.mxu0 %v2591
        %2780 = vmatpush.bf16.msra.mxu0 %v2587
        %2781 = vmatpush.bf16.msra.mxu0 %v2583
        %2782 = vmatpush.bf16.msra.mxu0 %v2579
        %2783 = vmatmul.bf16.gmra.mxu0 %v2680
        %v2784 = vpop.f32.mrf.mxu0
        %v2785 = vadd.f32 %v2627, %v2784
        %v2786 = vpop.f32.mrf.mxu0
        %v2787 = vadd.f32 %v2632, %v2786
        %2788 = vmatmul.bf16.gmra.mxu0 %v2681
        %v2789 = vpop.f32.mrf.mxu0
        %v2790 = vadd.f32 %v2637, %v2789
        %v2791 = vpop.f32.mrf.mxu0
        %v2792 = vadd.f32 %v2642, %v2791
        %2793 = vmatmul.bf16.gmra.mxu0 %v2682
        %v2794 = vpop.f32.mrf.mxu0
        %v2795 = vadd.f32 %v2647, %v2794
        %v2796 = vpop.f32.mrf.mxu0
        %v2797 = vadd.f32 %v2652, %v2796
        %2798 = vmatmul.bf16.gmra.mxu0 %v2683
        %v2799 = vpop.f32.mrf.mxu0
        %v2800 = vadd.f32 %v2657, %v2799
        %v2801 = vpop.f32.mrf.mxu0
        %v2802 = vadd.f32 %v2662, %v2801
        %2803 = vdwg.mxu0
        %v2804 = vmax.f32 %v2698, 0.0
        %v2805 = vmax.f32 %v2727, 0.0
        %v2806 = vmax.f32 %v2756, 0.0
        %v2807 = vmax.f32 %v2785, 0.0
        %v2808 = vmax.f32 %v2700, 0.0
        %v2809 = vmax.f32 %v2729, 0.0
        %v2810 = vmax.f32 %v2758, 0.0
        %v2811 = vmax.f32 %v2787, 0.0
        %v2812 = vmax.f32 %v2703, 0.0
        %v2813 = vmax.f32 %v2732, 0.0
        %v2814 = vmax.f32 %v2761, 0.0
        %v2815 = vmax.f32 %v2790, 0.0
        %v2816 = vmax.f32 %v2705, 0.0
        %v2817 = vmax.f32 %v2734, 0.0
        %v2818 = vmax.f32 %v2763, 0.0
        %v2819 = vmax.f32 %v2792, 0.0
        %v2820 = vmax.f32 %v2708, 0.0
        %v2821 = vmax.f32 %v2737, 0.0
        %v2822 = vmax.f32 %v2766, 0.0
        %v2823 = vmax.f32 %v2795, 0.0
        %v2824 = vmax.f32 %v2710, 0.0
        %v2825 = vmax.f32 %v2739, 0.0
        %v2826 = vmax.f32 %v2768, 0.0
        %v2827 = vmax.f32 %v2797, 0.0
        %v2828 = vmax.f32 %v2713, 0.0
        %v2829 = vmax.f32 %v2742, 0.0
        %v2830 = vmax.f32 %v2771, 0.0
        %v2831 = vmax.f32 %v2800, 0.0
        %v2832 = vmax.f32 %v2715, 0.0
        %v2833 = vmax.f32 %v2744, 0.0
        %v2834 = vmax.f32 %v2773, 0.0
        %v2835 = vmax.f32 %v2802, 0.0
        %v2836 = vpack.c.bf16 %v2808, %v2804
        %v2837 = vpack.c.bf16 %v2809, %v2805
        %v2838 = vpack.c.bf16 %v2810, %v2806
        %v2839 = vpack.c.bf16 %v2811, %v2807
        %v2840 = vpack.c.bf16 %v2816, %v2812
        %v2841 = vpack.c.bf16 %v2817, %v2813
        %v2842 = vpack.c.bf16 %v2818, %v2814
        %v2843 = vpack.c.bf16 %v2819, %v2815
        %v2844 = vpack.c.bf16 %v2824, %v2820
        %v2845 = vpack.c.bf16 %v2825, %v2821
        %v2846 = vpack.c.bf16 %v2826, %v2822
        %v2847 = vpack.c.bf16 %v2827, %v2823
        %v2848 = vpack.c.bf16 %v2832, %v2828
        %v2849 = vpack.c.bf16 %v2833, %v2829
        %v2850 = vpack.c.bf16 %v2834, %v2830
        %v2851 = vpack.c.bf16 %v2835, %v2831
        %v2852 = vld [vmem:[#allocation9] sm:$0x3]
        %v2853 = vld [vmem:[%s8] sm:$0x7]
        %2855 = vset.pattern.permute.xlu0 0
        %2856 = vperm.xlu0 %2855, %v2853
        %v2857 = vpop.permute.xlu0 %2856
        %vm2859 = vcmask 523264
        %v2861 = vsel %vm2859, %v2852, 0
        %2863 = vmatpush.bf16.msra.mxu0 0
        %2864 = vmatpush.bf16.msra.mxu0 0
        %2865 = vmatpush.bf16.msra.mxu0 0
        %2866 = vmatpush.bf16.msra.mxu0 0
        %2867 = vmatpush.bf16.msra.mxu0 %v2848
        %2868 = vmatpush.bf16.msra.mxu0 %v2844
        %2869 = vmatpush.bf16.msra.mxu0 %v2840
        %2870 = vmatpush.bf16.msra.mxu0 %v2836
        %2871 = vmatmul.bf16.gmra.mxu0 %v2861
        %v2872 = vpop.f32.mrf.mxu0
        %v2873 = vadd.f32 %v2857, %v2872
        %v2874 = vpop.f32.mrf.mxu0
        %2875 = vdwg.mxu0
        %2876 = vmatpush.bf16.msra.mxu0 0
        %2877 = vmatpush.bf16.msra.mxu0 0
        %2878 = vmatpush.bf16.msra.mxu0 0
        %2879 = vmatpush.bf16.msra.mxu0 0
        %2880 = vmatpush.bf16.msra.mxu0 %v2849
        %2881 = vmatpush.bf16.msra.mxu0 %v2845
        %2882 = vmatpush.bf16.msra.mxu0 %v2841
        %2883 = vmatpush.bf16.msra.mxu0 %v2837
        %2884 = vmatmul.bf16.gmra.mxu0 %v2861
        %v2885 = vpop.f32.mrf.mxu0
        %v2886 = vadd.f32 %v2857, %v2885
        %v2887 = vpop.f32.mrf.mxu0
        %2888 = vdwg.mxu0
        %2889 = vmatpush.bf16.msra.mxu0 0
        %2890 = vmatpush.bf16.msra.mxu0 0
        %2891 = vmatpush.bf16.msra.mxu0 0
        %2892 = vmatpush.bf16.msra.mxu0 0
        %2893 = vmatpush.bf16.msra.mxu0 %v2850
        %2894 = vmatpush.bf16.msra.mxu0 %v2846
        %2895 = vmatpush.bf16.msra.mxu0 %v2842
        %2896 = vmatpush.bf16.msra.mxu0 %v2838
        %2897 = vmatmul.bf16.gmra.mxu0 %v2861
        %v2898 = vpop.f32.mrf.mxu0
        %v2899 = vadd.f32 %v2857, %v2898
        %v2900 = vpop.f32.mrf.mxu0
        %2901 = vdwg.mxu0
        %2902 = vmatpush.bf16.msra.mxu0 0
        %2903 = vmatpush.bf16.msra.mxu0 0
        %2904 = vmatpush.bf16.msra.mxu0 0
        %2905 = vmatpush.bf16.msra.mxu0 0
        %2906 = vmatpush.bf16.msra.mxu0 %v2851
        %2907 = vmatpush.bf16.msra.mxu0 %v2847
        %2908 = vmatpush.bf16.msra.mxu0 %v2843
        %2909 = vmatpush.bf16.msra.mxu0 %v2839
        %2910 = vmatmul.bf16.gmra.mxu0 %v2861
        %v2911 = vpop.f32.mrf.mxu0
        %v2912 = vadd.f32 %v2857, %v2911
        %v2913 = vpop.f32.mrf.mxu0
        %2914 = vdwg.mxu0
        %v2919 = vrot.slane %v2886, 4
        %v2920 = vrot.slane %v2912, 4
        %vm2921 = vcmask 1043456
        %v2922 = vsel %vm2921, %v2873, %v2919
        %v2923 = vsel %vm2921, %v2899, %v2920
        %2926 = vst [vmem:[%s445] sm:$0x77] %v2922
        %2927 = vst [vmem:[%s445 + $0x8] sm:$0x77] %v2923
        %s2928 = smul.u32 4, %s30
        %p2929 = scmp.lt.s32.totalorder %s29, 1
        %s2930 = scalar_select %p2929, %s29, 1
        %p2931 = scmp.lt.s32.totalorder %s2928, 7
        %s2932 = scalar_select %p2931, %s2928, 7
        %s2933 = smul.addr %s2930, 8
        %s2934 = sadd.s32 %s2932, %s2933
        %s2935 = smul.addr %s2934, 4
        %s2936 = scalar_lea.vmem %s9, %s2935
        // Predicated region
        $region77: #{tpu_custom_call.1} parent=55 // pred_check
          %p2937 = pneg %p253
        $region78: #{tpu_custom_call.1} parent=55 // pred_check_branch
          %2939 = sbr.rel (%p2937) target = $region80
        $region79: #{tpu_custom_call.1} parent=55 // pred_region
          %s2940 = smul.u32 4, %s30
        $region80: #{tpu_custom_call.1} parent=55 // pred_fallthru
          _
      $region56: #{tpu_custom_call.1} parent=5 // pred_fallthru
        _
      %p2941 = scmp.le.s32.totalorder 2, %s20
      // Predicated region
      $region81: #{tpu_custom_call.1} parent=5 // pred_check
        %p2942 = pneg %p2941
      $region82: #{tpu_custom_call.1} parent=5 // pred_check_branch
        %2944 = sbr.rel (%p2942) target = $region84
      $region83: #{tpu_custom_call.1} parent=5 // pred_region
        %s2945 = ssub.s32 %s20, 2
        // Predicated region
        $region85: #{tpu_custom_call.1} parent=83 // pred_check
          %p2946 = pneg %p259
        $region86: #{tpu_custom_call.1} parent=83 // pred_check_branch
          %2948 = sbr.rel (%p2946) target = $region88
        $region87: #{tpu_custom_call.1} parent=83 // pred_region
          %s2949 = smul.u32 4, %s32
          %p2950 = scmp.lt.s32.totalorder %s31, 1
          %s2951 = scalar_select %p2950, %s31, 1
          %p2952 = scmp.lt.s32.totalorder %s2949, 7
          %s2953 = scalar_select %p2952, %s2949, 7
          %s2954 = smul.addr %s2951, 8
          %s2955 = sadd.s32 %s2953, %s2954
          %s2956 = smul.addr %s2955, 4
          %s2957 = scalar_lea.vmem %s9, %s2956
        $region88: #{tpu_custom_call.1} parent=83 // pred_fallthru
          _
      $region84: #{tpu_custom_call.1} parent=5 // pred_fallthru
        _
    $region6: #{tpu_custom_call.1} parent=1 // loop_footer
      %s24 = sadd.s32 1, %s20
    $region7: #{tpu_custom_call.1} parent=1 // loop_footer_branch
      %19 = sbr.rel target = $region3
    $region8: #{tpu_custom_call.1} parent=1 // loop_exit
      _
    %2958 = vsyncpa [#allocation3], 1
    %s2959 = scalar_lea.sflag [#allocation3], 1
    %2960 = vsyncpa %s2959, 1
    %2961 = vsyncpa [#allocation5], 1
    %2962 = vsyncpa [#allocation8], 1

</llo_original>
